<compile_context>
chip_gen: v6e
topology: v6e:2x2x1
jax: 0.10.0
libtpu: 0.0.40
codegen_flags: <defaults>
</compile_context>

<pallas_src>
import functools
import numpy as np
import jax
import jax.numpy as jnp
from jax.experimental import pallas as pl
from jax.experimental.pallas import tpu as pltpu

# ---------------- config (mirrors pixelssl `args`) ----------------
IM_SIZE = 16   # args.im_size
MU = 1.5       # args.mu
NU = 2         # args.nu


# ---------------- Gaussian weights (match pixelssl GaussianBlurLayer) ---------
def _odd_up(k: int) -> int:
    return k + 1 if k % 2 == 0 else k


def _gaussian_1d(ksize: int) -> np.ndarray:
    """1-D factor of pixelssl's GaussianBlurLayer weights.

    pixelssl builds the 2-D weights by running scipy.ndimage.gaussian_filter
    (truncate=4.0, mode='reflect') on a ksize x ksize delta image.  The filter
    is separable and the delta factorizes, so the 2-D weights equal
    outer(g, g) with g the 1-D filtered delta computed here in pure numpy
    (same truncation radius and reflect/symmetric boundary handling).
    """
    sigma = 0.3 * ((ksize - 1) * 0.5 - 1) + 0.8
    radius = int(4.0 * sigma + 0.5)
    x = np.arange(-radius, radius + 1, dtype=np.float64)
    w = np.exp(-0.5 * (x / sigma) ** 2)
    w /= w.sum()
    d = np.zeros(ksize, np.float64)
    d[ksize // 2] = 1.0
    dp = np.pad(d, radius, mode="symmetric")        # scipy 'reflect' == numpy 'symmetric'
    g = np.array([np.dot(w, dp[i:i + 2 * radius + 1]) for i in range(ksize)])
    return g


def _kernel_weights(im_size: int):
    blur_k = _odd_up(int(im_size / 8))
    reblur_k = _odd_up(int(im_size / 4))
    return _gaussian_1d(blur_k), _gaussian_1d(reblur_k)


# ---------------- in-kernel helpers (jnp values + padded VMEM scratch) --------
def _fill_reflect(pad_ref, x, p, H, W):
    """Write ReflectionPad2d(p)(x) into pad_ref[0:H+2p, 0:W+2p] (static p<=2)."""
    Hp = H + 2 * p
    pad_ref[p:p + H, p:p + W] = x
    # mirrored rows (reflection excludes the edge, like nn.ReflectionPad2d)
    for j in range(1, p + 1):
        pad_ref[p - j:p - j + 1, p:p + W] = x[j:j + 1, :]
        pad_ref[p + H - 1 + j:p + H + j, p:p + W] = x[H - 1 - j:H - j, :]
    # mirrored columns (taken from the already row-padded buffer -> corners ok)
    for j in range(1, p + 1):
        pad_ref[0:Hp, p - j:p - j + 1] = pad_ref[0:Hp, p + j:p + j + 1]
        pad_ref[0:Hp, p + W - 1 + j:p + W + j] = pad_ref[0:Hp, p + W - 1 - j:p + W - j]


def _blur(pad_ref, x, g, H, W):
    """Separable Gaussian blur on reflection-padded x (horizontal then vertical)."""
    k = g.shape[0]
    p = k // 2
    Hp = H + 2 * p
    _fill_reflect(pad_ref, x, p, H, W)
    # horizontal pass over all padded rows: (Hp, W)
    h = float(g[0]) * pad_ref[0:Hp, 0:W]
    for dx in range(1, k):
        h = h + float(g[dx]) * pad_ref[0:Hp, dx:dx + W]
    # vertical pass (sublane shifts of the in-register intermediate): (H, W)
    v = float(g[0]) * h[0:H, :]
    for dy in range(1, k):
        v = v + float(g[dy]) * h[dy:dy + H, :]
    return v


def _dilate(pad_ref, x, H, W):
    """3x3 stride-1 max-pool on reflection-padded x (row max, then column max)."""
    Hp = H + 2
    _fill_reflect(pad_ref, x, 1, H, W)
    h = jnp.maximum(jnp.maximum(pad_ref[0:Hp, 0:W], pad_ref[0:Hp, 1:W + 1]),
                    pad_ref[0:Hp, 2:W + 2])
    return jnp.maximum(jnp.maximum(h[0:H, :], h[1:H + 1, :]), h[2:H + 2, :])


# ---------------- fused kernel (one batch element per grid step) --------------
def _fdgt_kernel(mu, nu, g_blur, g_reblur, H, W,
                 pred_ref, gt_ref, o_ref, pad_ref):
    # sum_c |gt - pred| * mu   (blur is linear, so mu before/after blur is equal)
    d = jnp.sum(jnp.abs(gt_ref[...] - pred_ref[...]), axis=1)[0] * mu   # (H, W)

    d = _blur(pad_ref, d, g_blur, H, W)                                  # self.blur
    for _ in range(nu):                                                  # static unroll
        d = _dilate(pad_ref, d, H, W)                                    # self.dilate
        d = _blur(pad_ref, d, g_reblur, H, W)                            # self.reblur

    # per-sample global min/max normalization
    dmax = jnp.max(jnp.max(d, axis=1, keepdims=True), axis=0, keepdims=True)
    dmin = jnp.min(jnp.min(d, axis=1, keepdims=True), axis=0, keepdims=True)
    inv = 1.0 / (dmax - dmin + 1e-9)
    o_ref[...] = ((d - dmin) * inv)[None]


# ---------------- wrapper ------------------------------------------------------
def fdgt_generator(pred, gt, *, im_size=IM_SIZE, mu=MU, nu=NU):
    """Forward pass of FDGTGenerator. pred/gt: (N, C, H, W) float32 -> (N,1,H,W)."""
    N, C, H, W = pred.shape
    g_blur, g_reblur = _kernel_weights(im_size)
    pmax = max(g_blur.shape[0] // 2, g_reblur.shape[0] // 2, 1)

    kern = functools.partial(_fdgt_kernel, float(mu), int(nu), g_blur, g_reblur, H, W)
    out = pl.pallas_call(
        kern,
        out_shape=jax.ShapeDtypeStruct((N, H, W), jnp.float32),
        grid=(N,),
        in_specs=[pl.BlockSpec((1, C, H, W), lambda n: (n, 0, 0, 0)),
                  pl.BlockSpec((1, C, H, W), lambda n: (n, 0, 0, 0))],
        out_specs=pl.BlockSpec((1, H, W), lambda n: (n, 0, 0)),
        scratch_shapes=[pltpu.VMEM((H + 2 * pmax, W + 2 * pmax), jnp.float32)],
        compiler_params=pltpu.CompilerParams(dimension_semantics=("parallel",)),
    )(pred.astype(jnp.float32), gt.astype(jnp.float32))
    return out[:, None, :, :]


# ---------------- pure-JAX reference (for correctness check) ------------------
def _reference(pred, gt, im_size, mu, nu):
    N, C, H, W = pred.shape
    g_blur, g_reblur = _kernel_weights(im_size)
    d = jnp.sum(jnp.abs(gt - pred), axis=1) * mu   # (N, H, W)

    def blur(x, g):
        k = g.shape[0]
        p = k // 2
        xp = jnp.pad(x, ((0, 0), (p, p), (p, p)), mode="reflect")
        out = jnp.zeros_like(x)
        for dy in range(k):
            for dx in range(k):
                out = out + float(g[dy]) * float(g[dx]) * xp[:, dy:dy + H, dx:dx + W]
        return out

    def dilate(x):
        xp = jnp.pad(x, ((0, 0), (1, 1), (1, 1)), mode="reflect")
        out = xp[:, 0:H, 0:W]
        for dy in range(3):
            for dx in range(3):
                out = jnp.maximum(out, xp[:, dy:dy + H, dx:dx + W])
        return out

    d = blur(d, g_blur)
    for _ in range(nu):
        d = blur(dilate(d), g_reblur)
    dmax = jnp.max(d, axis=(1, 2), keepdims=True)
    dmin = jnp.min(d, axis=(1, 2), keepdims=True)
    return ((d - dmin) / (dmax - dmin + 1e-9))[:, None, :, :]


if __name__ == "__main__":
    key = jax.random.PRNGKey(0)
    kp, kg = jax.random.split(key)
    N, C, H, W = 2, 4, IM_SIZE, IM_SIZE
    # pred/gt behave like (softmax) score maps; any float tensors work.
    pred = jax.nn.softmax(jax.random.normal(kp, (N, C, H, W), jnp.float32), axis=1)
    gt = jax.nn.one_hot(
        jax.random.randint(kg, (N, H, W), 0, C), C, dtype=jnp.float32
    ).transpose(0, 3, 1, 2)

    out = fdgt_generator(pred, gt)
    out = jax.block_until_ready(out)

    assert out.shape == (N, 1, H, W)
    assert bool(jnp.all(jnp.isfinite(out)))

    ref = jax.block_until_ready(_reference(pred, gt, IM_SIZE, MU, NU))
    np.testing.assert_allclose(np.asarray(out), np.asarray(ref), rtol=1e-4, atol=1e-5)

    print("KERNEL_OK")
</pallas_src>

<mosaic_0001>
module attributes {stable_mosaic.version = 11 : i64} {
  func.func @_fdgt_kernel(%arg0: i32, %arg1: memref<1x4x16x16xf32, #tpu.memory_space<vmem>>, %arg2: memref<1x4x16x16xf32, #tpu.memory_space<vmem>>, %arg3: memref<1x16x16xf32, #tpu.memory_space<vmem>>, %arg4: memref<20x20xf32, #tpu.memory_space<vmem>>) attributes {dimension_semantics = [#tpu.dimension_semantics<parallel>], iteration_bounds = array<i64: 2>, scalar_prefetch = 0 : i64, scratch_operands = 1 : i64, tpu.core_type = #tpu.core_type<tc>, window_params = [{transform_indices = @transform_0, window_bounds = array<i64: 1, 4, 16, 16>}, {transform_indices = @transform_1, window_bounds = array<i64: 1, 4, 16, 16>}, {transform_indices = @transform_2, window_bounds = array<i64: 1, 16, 16>}]} {
    %c0 = arith.constant 0 : index
    %c0_0 = arith.constant 0 : index
    %c0_1 = arith.constant 0 : index
    %c0_2 = arith.constant 0 : index
    %0 = vector.load %arg2[%c0, %c0_0, %c0_1, %c0_2] : memref<1x4x16x16xf32, #tpu.memory_space<vmem>>, vector<1x4x16x16xf32>
    %c0_3 = arith.constant 0 : index
    %c0_4 = arith.constant 0 : index
    %c0_5 = arith.constant 0 : index
    %c0_6 = arith.constant 0 : index
    %1 = vector.load %arg1[%c0_3, %c0_4, %c0_5, %c0_6] : memref<1x4x16x16xf32, #tpu.memory_space<vmem>>, vector<1x4x16x16xf32>
    %2 = arith.subf %0, %1 : vector<1x4x16x16xf32>
    %3 = math.absf %2 : vector<1x4x16x16xf32>
    %cst = arith.constant dense<0.000000e+00> : vector<1x16x16xf32>
    %4 = vector.multi_reduction <add>, %3, %cst [1] : vector<1x4x16x16xf32> to vector<1x16x16xf32>
    %5 = vector.shape_cast %4 : vector<1x16x16xf32> to vector<16x16xf32>
    %cst_7 = arith.constant 1.500000e+00 : f32
    %6 = vector.broadcast %cst_7 : f32 to vector<16x16xf32>
    %7 = arith.mulf %5, %6 : vector<16x16xf32>
    %c1 = arith.constant 1 : index
    %c1_8 = arith.constant 1 : index
    %8 = vector.load %arg4[%c1, %c1_8] : memref<20x20xf32, #tpu.memory_space<vmem>>, vector<16x16xf32>
    tpu.vector_store %arg4[%c1, %c1_8], %7 {strides = array<i32>} : memref<20x20xf32, #tpu.memory_space<vmem>>, vector<16x16xf32>,
    %9 = vector.extract_strided_slice %7 {offsets = [1, 0], sizes = [1, 16], strides = [1, 1]} : vector<16x16xf32> to vector<1x16xf32>
    %c0_9 = arith.constant 0 : index
    %c1_10 = arith.constant 1 : index
    %10 = vector.load %arg4[%c0_9, %c1_10] : memref<20x20xf32, #tpu.memory_space<vmem>>, vector<1x16xf32>
    tpu.vector_store %arg4[%c0_9, %c1_10], %9 {strides = array<i32>} : memref<20x20xf32, #tpu.memory_space<vmem>>, vector<1x16xf32>,
    %11 = vector.extract_strided_slice %7 {offsets = [14, 0], sizes = [1, 16], strides = [1, 1]} : vector<16x16xf32> to vector<1x16xf32>
    %c17 = arith.constant 17 : index
    %c1_11 = arith.constant 1 : index
    %12 = vector.load %arg4[%c17, %c1_11] : memref<20x20xf32, #tpu.memory_space<vmem>>, vector<1x16xf32>
    tpu.vector_store %arg4[%c17, %c1_11], %11 {strides = array<i32>} : memref<20x20xf32, #tpu.memory_space<vmem>>, vector<1x16xf32>,
    %c0_12 = arith.constant 0 : index
    %c2 = arith.constant 2 : index
    %13 = vector.load %arg4[%c0_12, %c2] : memref<20x20xf32, #tpu.memory_space<vmem>>, vector<18x1xf32>
    %c0_13 = arith.constant 0 : index
    %c0_14 = arith.constant 0 : index
    %14 = vector.load %arg4[%c0_13, %c0_14] : memref<20x20xf32, #tpu.memory_space<vmem>>, vector<18x1xf32>
    tpu.vector_store %arg4[%c0_13, %c0_14], %13 {strides = array<i32>} : memref<20x20xf32, #tpu.memory_space<vmem>>, vector<18x1xf32>,
    %c0_15 = arith.constant 0 : index
    %c15 = arith.constant 15 : index
    %15 = vector.load %arg4[%c0_15, %c15] : memref<20x20xf32, #tpu.memory_space<vmem>>, vector<18x1xf32>
    %c0_16 = arith.constant 0 : index
    %c17_17 = arith.constant 17 : index
    %16 = vector.load %arg4[%c0_16, %c17_17] : memref<20x20xf32, #tpu.memory_space<vmem>>, vector<18x1xf32>
    tpu.vector_store %arg4[%c0_16, %c17_17], %15 {strides = array<i32>} : memref<20x20xf32, #tpu.memory_space<vmem>>, vector<18x1xf32>,
    %c0_18 = arith.constant 0 : index
    %c0_19 = arith.constant 0 : index
    %17 = vector.load %arg4[%c0_18, %c0_19] : memref<20x20xf32, #tpu.memory_space<vmem>>, vector<18x16xf32>
    %cst_20 = arith.constant 0.250221044 : f32
    %18 = vector.broadcast %cst_20 : f32 to vector<18x16xf32>
    %19 = arith.mulf %18, %17 : vector<18x16xf32>
    %c0_21 = arith.constant 0 : index
    %c1_22 = arith.constant 1 : index
    %20 = vector.load %arg4[%c0_21, %c1_22] : memref<20x20xf32, #tpu.memory_space<vmem>>, vector<18x16xf32>
    %cst_23 = arith.constant 0.499557942 : f32
    %21 = vector.broadcast %cst_23 : f32 to vector<18x16xf32>
    %22 = arith.mulf %21, %20 : vector<18x16xf32>
    %23 = arith.addf %19, %22 : vector<18x16xf32>
    %c0_24 = arith.constant 0 : index
    %c2_25 = arith.constant 2 : index
    %24 = vector.load %arg4[%c0_24, %c2_25] : memref<20x20xf32, #tpu.memory_space<vmem>>, vector<18x16xf32>
    %cst_26 = arith.constant 0.250221044 : f32
    %25 = vector.broadcast %cst_26 : f32 to vector<18x16xf32>
    %26 = arith.mulf %25, %24 : vector<18x16xf32>
    %27 = arith.addf %23, %26 : vector<18x16xf32>
    %28 = vector.extract_strided_slice %27 {offsets = [0, 0], sizes = [16, 16], strides = [1, 1]} : vector<18x16xf32> to vector<16x16xf32>
    %cst_27 = arith.constant 0.250221044 : f32
    %29 = vector.broadcast %cst_27 : f32 to vector<16x16xf32>
    %30 = arith.mulf %29, %28 : vector<16x16xf32>
    %31 = vector.extract_strided_slice %27 {offsets = [1, 0], sizes = [16, 16], strides = [1, 1]} : vector<18x16xf32> to vector<16x16xf32>
    %cst_28 = arith.constant 0.499557942 : f32
    %32 = vector.broadcast %cst_28 : f32 to vector<16x16xf32>
    %33 = arith.mulf %32, %31 : vector<16x16xf32>
    %34 = arith.addf %30, %33 : vector<16x16xf32>
    %35 = vector.extract_strided_slice %27 {offsets = [2, 0], sizes = [16, 16], strides = [1, 1]} : vector<18x16xf32> to vector<16x16xf32>
    %cst_29 = arith.constant 0.250221044 : f32
    %36 = vector.broadcast %cst_29 : f32 to vector<16x16xf32>
    %37 = arith.mulf %36, %35 : vector<16x16xf32>
    %38 = arith.addf %34, %37 : vector<16x16xf32>
    %c1_30 = arith.constant 1 : index
    %c1_31 = arith.constant 1 : index
    %39 = vector.load %arg4[%c1_30, %c1_31] : memref<20x20xf32, #tpu.memory_space<vmem>>, vector<16x16xf32>
    tpu.vector_store %arg4[%c1_30, %c1_31], %38 {strides = array<i32>} : memref<20x20xf32, #tpu.memory_space<vmem>>, vector<16x16xf32>,
    %40 = vector.extract_strided_slice %38 {offsets = [1, 0], sizes = [1, 16], strides = [1, 1]} : vector<16x16xf32> to vector<1x16xf32>
    %c0_32 = arith.constant 0 : index
    %c1_33 = arith.constant 1 : index
    %41 = vector.load %arg4[%c0_32, %c1_33] : memref<20x20xf32, #tpu.memory_space<vmem>>, vector<1x16xf32>
    tpu.vector_store %arg4[%c0_32, %c1_33], %40 {strides = array<i32>} : memref<20x20xf32, #tpu.memory_space<vmem>>, vector<1x16xf32>,
    %42 = vector.extract_strided_slice %38 {offsets = [14, 0], sizes = [1, 16], strides = [1, 1]} : vector<16x16xf32> to vector<1x16xf32>
    %c17_34 = arith.constant 17 : index
    %c1_35 = arith.constant 1 : index
    %43 = vector.load %arg4[%c17_34, %c1_35] : memref<20x20xf32, #tpu.memory_space<vmem>>, vector<1x16xf32>
    tpu.vector_store %arg4[%c17_34, %c1_35], %42 {strides = array<i32>} : memref<20x20xf32, #tpu.memory_space<vmem>>, vector<1x16xf32>,
    %c0_36 = arith.constant 0 : index
    %c2_37 = arith.constant 2 : index
    %44 = vector.load %arg4[%c0_36, %c2_37] : memref<20x20xf32, #tpu.memory_space<vmem>>, vector<18x1xf32>
    %c0_38 = arith.constant 0 : index
    %c0_39 = arith.constant 0 : index
    %45 = vector.load %arg4[%c0_38, %c0_39] : memref<20x20xf32, #tpu.memory_space<vmem>>, vector<18x1xf32>
    tpu.vector_store %arg4[%c0_38, %c0_39], %44 {strides = array<i32>} : memref<20x20xf32, #tpu.memory_space<vmem>>, vector<18x1xf32>,
    %c0_40 = arith.constant 0 : index
    %c15_41 = arith.constant 15 : index
    %46 = vector.load %arg4[%c0_40, %c15_41] : memref<20x20xf32, #tpu.memory_space<vmem>>, vector<18x1xf32>
    %c0_42 = arith.constant 0 : index
    %c17_43 = arith.constant 17 : index
    %47 = vector.load %arg4[%c0_42, %c17_43] : memref<20x20xf32, #tpu.memory_space<vmem>>, vector<18x1xf32>
    tpu.vector_store %arg4[%c0_42, %c17_43], %46 {strides = array<i32>} : memref<20x20xf32, #tpu.memory_space<vmem>>, vector<18x1xf32>,
    %c0_44 = arith.constant 0 : index
    %c0_45 = arith.constant 0 : index
    %48 = vector.load %arg4[%c0_44, %c0_45] : memref<20x20xf32, #tpu.memory_space<vmem>>, vector<18x16xf32>
    %c0_46 = arith.constant 0 : index
    %c1_47 = arith.constant 1 : index
    %49 = vector.load %arg4[%c0_46, %c1_47] : memref<20x20xf32, #tpu.memory_space<vmem>>, vector<18x16xf32>
    %50 = arith.maximumf %48, %49 : vector<18x16xf32>
    %c0_48 = arith.constant 0 : index
    %c2_49 = arith.constant 2 : index
    %51 = vector.load %arg4[%c0_48, %c2_49] : memref<20x20xf32, #tpu.memory_space<vmem>>, vector<18x16xf32>
    %52 = arith.maximumf %50, %51 : vector<18x16xf32>
    %53 = vector.extract_strided_slice %52 {offsets = [0, 0], sizes = [16, 16], strides = [1, 1]} : vector<18x16xf32> to vector<16x16xf32>
    %54 = vector.extract_strided_slice %52 {offsets = [1, 0], sizes = [16, 16], strides = [1, 1]} : vector<18x16xf32> to vector<16x16xf32>
    %55 = arith.maximumf %53, %54 : vector<16x16xf32>
    %56 = vector.extract_strided_slice %52 {offsets = [2, 0], sizes = [16, 16], strides = [1, 1]} : vector<18x16xf32> to vector<16x16xf32>
    %57 = arith.maximumf %55, %56 : vector<16x16xf32>
    %c2_50 = arith.constant 2 : index
    %c2_51 = arith.constant 2 : index
    %58 = vector.load %arg4[%c2_50, %c2_51] : memref<20x20xf32, #tpu.memory_space<vmem>>, vector<16x16xf32>
    tpu.vector_store %arg4[%c2_50, %c2_51], %57 {strides = array<i32>} : memref<20x20xf32, #tpu.memory_space<vmem>>, vector<16x16xf32>,
    %59 = vector.extract_strided_slice %57 {offsets = [1, 0], sizes = [1, 16], strides = [1, 1]} : vector<16x16xf32> to vector<1x16xf32>
    %c1_52 = arith.constant 1 : index
    %c2_53 = arith.constant 2 : index
    %60 = vector.load %arg4[%c1_52, %c2_53] : memref<20x20xf32, #tpu.memory_space<vmem>>, vector<1x16xf32>
    tpu.vector_store %arg4[%c1_52, %c2_53], %59 {strides = array<i32>} : memref<20x20xf32, #tpu.memory_space<vmem>>, vector<1x16xf32>,
    %61 = vector.extract_strided_slice %57 {offsets = [14, 0], sizes = [1, 16], strides = [1, 1]} : vector<16x16xf32> to vector<1x16xf32>
    %c18 = arith.constant 18 : index
    %c2_54 = arith.constant 2 : index
    %62 = vector.load %arg4[%c18, %c2_54] : memref<20x20xf32, #tpu.memory_space<vmem>>, vector<1x16xf32>
    tpu.vector_store %arg4[%c18, %c2_54], %61 {strides = array<i32>} : memref<20x20xf32, #tpu.memory_space<vmem>>, vector<1x16xf32>,
    %63 = vector.extract_strided_slice %57 {offsets = [2, 0], sizes = [1, 16], strides = [1, 1]} : vector<16x16xf32> to vector<1x16xf32>
    %c0_55 = arith.constant 0 : index
    %c2_56 = arith.constant 2 : index
    %64 = vector.load %arg4[%c0_55, %c2_56] : memref<20x20xf32, #tpu.memory_space<vmem>>, vector<1x16xf32>
    tpu.vector_store %arg4[%c0_55, %c2_56], %63 {strides = array<i32>} : memref<20x20xf32, #tpu.memory_space<vmem>>, vector<1x16xf32>,
    %65 = vector.extract_strided_slice %57 {offsets = [13, 0], sizes = [1, 16], strides = [1, 1]} : vector<16x16xf32> to vector<1x16xf32>
    %c19 = arith.constant 19 : index
    %c2_57 = arith.constant 2 : index
    %66 = vector.load %arg4[%c19, %c2_57] : memref<20x20xf32, #tpu.memory_space<vmem>>, vector<1x16xf32>
    tpu.vector_store %arg4[%c19, %c2_57], %65 {strides = array<i32>} : memref<20x20xf32, #tpu.memory_space<vmem>>, vector<1x16xf32>,
    %c0_58 = arith.constant 0 : index
    %c3 = arith.constant 3 : index
    %67 = vector.load %arg4[%c0_58, %c3] : memref<20x20xf32, #tpu.memory_space<vmem>>, vector<20x1xf32>
    %c0_59 = arith.constant 0 : index
    %c1_60 = arith.constant 1 : index
    %68 = vector.load %arg4[%c0_59, %c1_60] : memref<20x20xf32, #tpu.memory_space<vmem>>, vector<20x1xf32>
    tpu.vector_store %arg4[%c0_59, %c1_60], %67 {strides = array<i32>} : memref<20x20xf32, #tpu.memory_space<vmem>>, vector<20x1xf32>,
    %c0_61 = arith.constant 0 : index
    %c16 = arith.constant 16 : index
    %69 = vector.load %arg4[%c0_61, %c16] : memref<20x20xf32, #tpu.memory_space<vmem>>, vector<20x1xf32>
    %c0_62 = arith.constant 0 : index
    %c18_63 = arith.constant 18 : index
    %70 = vector.load %arg4[%c0_62, %c18_63] : memref<20x20xf32, #tpu.memory_space<vmem>>, vector<20x1xf32>
    tpu.vector_store %arg4[%c0_62, %c18_63], %69 {strides = array<i32>} : memref<20x20xf32, #tpu.memory_space<vmem>>, vector<20x1xf32>,
    %c0_64 = arith.constant 0 : index
    %c4 = arith.constant 4 : index
    %71 = vector.load %arg4[%c0_64, %c4] : memref<20x20xf32, #tpu.memory_space<vmem>>, vector<20x1xf32>
    %c0_65 = arith.constant 0 : index
    %c0_66 = arith.constant 0 : index
    %72 = vector.load %arg4[%c0_65, %c0_66] : memref<20x20xf32, #tpu.memory_space<vmem>>, vector<20x1xf32>
    tpu.vector_store %arg4[%c0_65, %c0_66], %71 {strides = array<i32>} : memref<20x20xf32, #tpu.memory_space<vmem>>, vector<20x1xf32>,
    %c0_67 = arith.constant 0 : index
    %c15_68 = arith.constant 15 : index
    %73 = vector.load %arg4[%c0_67, %c15_68] : memref<20x20xf32, #tpu.memory_space<vmem>>, vector<20x1xf32>
    %c0_69 = arith.constant 0 : index
    %c19_70 = arith.constant 19 : index
    %74 = vector.load %arg4[%c0_69, %c19_70] : memref<20x20xf32, #tpu.memory_space<vmem>>, vector<20x1xf32>
    tpu.vector_store %arg4[%c0_69, %c19_70], %73 {strides = array<i32>} : memref<20x20xf32, #tpu.memory_space<vmem>>, vector<20x1xf32>,
    %c0_71 = arith.constant 0 : index
    %c0_72 = arith.constant 0 : index
    %75 = vector.load %arg4[%c0_71, %c0_72] : memref<20x20xf32, #tpu.memory_space<vmem>>, vector<20x16xf32>
    %cst_73 = arith.constant 0.0782501251 : f32
    %76 = vector.broadcast %cst_73 : f32 to vector<20x16xf32>
    %77 = arith.mulf %76, %75 : vector<20x16xf32>
    %c0_74 = arith.constant 0 : index
    %c1_75 = arith.constant 1 : index
    %78 = vector.load %arg4[%c0_74, %c1_75] : memref<20x20xf32, #tpu.memory_space<vmem>>, vector<20x16xf32>
    %cst_76 = arith.constant 0.240408137 : f32
    %79 = vector.broadcast %cst_76 : f32 to vector<20x16xf32>
    %80 = arith.mulf %79, %78 : vector<20x16xf32>
    %81 = arith.addf %77, %80 : vector<20x16xf32>
    %c0_77 = arith.constant 0 : index
    %c2_78 = arith.constant 2 : index
    %82 = vector.load %arg4[%c0_77, %c2_78] : memref<20x20xf32, #tpu.memory_space<vmem>>, vector<20x16xf32>
    %cst_79 = arith.constant 0.362683475 : f32
    %83 = vector.broadcast %cst_79 : f32 to vector<20x16xf32>
    %84 = arith.mulf %83, %82 : vector<20x16xf32>
    %85 = arith.addf %81, %84 : vector<20x16xf32>
    %c0_80 = arith.constant 0 : index
    %c3_81 = arith.constant 3 : index
    %86 = vector.load %arg4[%c0_80, %c3_81] : memref<20x20xf32, #tpu.memory_space<vmem>>, vector<20x16xf32>
    %cst_82 = arith.constant 0.240408137 : f32
    %87 = vector.broadcast %cst_82 : f32 to vector<20x16xf32>
    %88 = arith.mulf %87, %86 : vector<20x16xf32>
    %89 = arith.addf %85, %88 : vector<20x16xf32>
    %c0_83 = arith.constant 0 : index
    %c4_84 = arith.constant 4 : index
    %90 = vector.load %arg4[%c0_83, %c4_84] : memref<20x20xf32, #tpu.memory_space<vmem>>, vector<20x16xf32>
    %cst_85 = arith.constant 0.0782501251 : f32
    %91 = vector.broadcast %cst_85 : f32 to vector<20x16xf32>
    %92 = arith.mulf %91, %90 : vector<20x16xf32>
    %93 = arith.addf %89, %92 : vector<20x16xf32>
    %94 = vector.extract_strided_slice %93 {offsets = [0, 0], sizes = [16, 16], strides = [1, 1]} : vector<20x16xf32> to vector<16x16xf32>
    %cst_86 = arith.constant 0.0782501251 : f32
    %95 = vector.broadcast %cst_86 : f32 to vector<16x16xf32>
    %96 = arith.mulf %95, %94 : vector<16x16xf32>
    %97 = vector.extract_strided_slice %93 {offsets = [1, 0], sizes = [16, 16], strides = [1, 1]} : vector<20x16xf32> to vector<16x16xf32>
    %cst_87 = arith.constant 0.240408137 : f32
    %98 = vector.broadcast %cst_87 : f32 to vector<16x16xf32>
    %99 = arith.mulf %98, %97 : vector<16x16xf32>
    %100 = arith.addf %96, %99 : vector<16x16xf32>
    %101 = vector.extract_strided_slice %93 {offsets = [2, 0], sizes = [16, 16], strides = [1, 1]} : vector<20x16xf32> to vector<16x16xf32>
    %cst_88 = arith.constant 0.362683475 : f32
    %102 = vector.broadcast %cst_88 : f32 to vector<16x16xf32>
    %103 = arith.mulf %102, %101 : vector<16x16xf32>
    %104 = arith.addf %100, %103 : vector<16x16xf32>
    %105 = vector.extract_strided_slice %93 {offsets = [3, 0], sizes = [16, 16], strides = [1, 1]} : vector<20x16xf32> to vector<16x16xf32>
    %cst_89 = arith.constant 0.240408137 : f32
    %106 = vector.broadcast %cst_89 : f32 to vector<16x16xf32>
    %107 = arith.mulf %106, %105 : vector<16x16xf32>
    %108 = arith.addf %104, %107 : vector<16x16xf32>
    %109 = vector.extract_strided_slice %93 {offsets = [4, 0], sizes = [16, 16], strides = [1, 1]} : vector<20x16xf32> to vector<16x16xf32>
    %cst_90 = arith.constant 0.0782501251 : f32
    %110 = vector.broadcast %cst_90 : f32 to vector<16x16xf32>
    %111 = arith.mulf %110, %109 : vector<16x16xf32>
    %112 = arith.addf %108, %111 : vector<16x16xf32>
    %c1_91 = arith.constant 1 : index
    %c1_92 = arith.constant 1 : index
    %113 = vector.load %arg4[%c1_91, %c1_92] : memref<20x20xf32, #tpu.memory_space<vmem>>, vector<16x16xf32>
    tpu.vector_store %arg4[%c1_91, %c1_92], %112 {strides = array<i32>} : memref<20x20xf32, #tpu.memory_space<vmem>>, vector<16x16xf32>,
    %114 = vector.extract_strided_slice %112 {offsets = [1, 0], sizes = [1, 16], strides = [1, 1]} : vector<16x16xf32> to vector<1x16xf32>
    %c0_93 = arith.constant 0 : index
    %c1_94 = arith.constant 1 : index
    %115 = vector.load %arg4[%c0_93, %c1_94] : memref<20x20xf32, #tpu.memory_space<vmem>>, vector<1x16xf32>
    tpu.vector_store %arg4[%c0_93, %c1_94], %114 {strides = array<i32>} : memref<20x20xf32, #tpu.memory_space<vmem>>, vector<1x16xf32>,
    %116 = vector.extract_strided_slice %112 {offsets = [14, 0], sizes = [1, 16], strides = [1, 1]} : vector<16x16xf32> to vector<1x16xf32>
    %c17_95 = arith.constant 17 : index
    %c1_96 = arith.constant 1 : index
    %117 = vector.load %arg4[%c17_95, %c1_96] : memref<20x20xf32, #tpu.memory_space<vmem>>, vector<1x16xf32>
    tpu.vector_store %arg4[%c17_95, %c1_96], %116 {strides = array<i32>} : memref<20x20xf32, #tpu.memory_space<vmem>>, vector<1x16xf32>,
    %c0_97 = arith.constant 0 : index
    %c2_98 = arith.constant 2 : index
    %118 = vector.load %arg4[%c0_97, %c2_98] : memref<20x20xf32, #tpu.memory_space<vmem>>, vector<18x1xf32>
    %c0_99 = arith.constant 0 : index
    %c0_100 = arith.constant 0 : index
    %119 = vector.load %arg4[%c0_99, %c0_100] : memref<20x20xf32, #tpu.memory_space<vmem>>, vector<18x1xf32>
    tpu.vector_store %arg4[%c0_99, %c0_100], %118 {strides = array<i32>} : memref<20x20xf32, #tpu.memory_space<vmem>>, vector<18x1xf32>,
    %c0_101 = arith.constant 0 : index
    %c15_102 = arith.constant 15 : index
    %120 = vector.load %arg4[%c0_101, %c15_102] : memref<20x20xf32, #tpu.memory_space<vmem>>, vector<18x1xf32>
    %c0_103 = arith.constant 0 : index
    %c17_104 = arith.constant 17 : index
    %121 = vector.load %arg4[%c0_103, %c17_104] : memref<20x20xf32, #tpu.memory_space<vmem>>, vector<18x1xf32>
    tpu.vector_store %arg4[%c0_103, %c17_104], %120 {strides = array<i32>} : memref<20x20xf32, #tpu.memory_space<vmem>>, vector<18x1xf32>,
    %c0_105 = arith.constant 0 : index
    %c0_106 = arith.constant 0 : index
    %122 = vector.load %arg4[%c0_105, %c0_106] : memref<20x20xf32, #tpu.memory_space<vmem>>, vector<18x16xf32>
    %c0_107 = arith.constant 0 : index
    %c1_108 = arith.constant 1 : index
    %123 = vector.load %arg4[%c0_107, %c1_108] : memref<20x20xf32, #tpu.memory_space<vmem>>, vector<18x16xf32>
    %124 = arith.maximumf %122, %123 : vector<18x16xf32>
    %c0_109 = arith.constant 0 : index
    %c2_110 = arith.constant 2 : index
    %125 = vector.load %arg4[%c0_109, %c2_110] : memref<20x20xf32, #tpu.memory_space<vmem>>, vector<18x16xf32>
    %126 = arith.maximumf %124, %125 : vector<18x16xf32>
    %127 = vector.extract_strided_slice %126 {offsets = [0, 0], sizes = [16, 16], strides = [1, 1]} : vector<18x16xf32> to vector<16x16xf32>
    %128 = vector.extract_strided_slice %126 {offsets = [1, 0], sizes = [16, 16], strides = [1, 1]} : vector<18x16xf32> to vector<16x16xf32>
    %129 = arith.maximumf %127, %128 : vector<16x16xf32>
    %130 = vector.extract_strided_slice %126 {offsets = [2, 0], sizes = [16, 16], strides = [1, 1]} : vector<18x16xf32> to vector<16x16xf32>
    %131 = arith.maximumf %129, %130 : vector<16x16xf32>
    %c2_111 = arith.constant 2 : index
    %c2_112 = arith.constant 2 : index
    %132 = vector.load %arg4[%c2_111, %c2_112] : memref<20x20xf32, #tpu.memory_space<vmem>>, vector<16x16xf32>
    tpu.vector_store %arg4[%c2_111, %c2_112], %131 {strides = array<i32>} : memref<20x20xf32, #tpu.memory_space<vmem>>, vector<16x16xf32>,
    %133 = vector.extract_strided_slice %131 {offsets = [1, 0], sizes = [1, 16], strides = [1, 1]} : vector<16x16xf32> to vector<1x16xf32>
    %c1_113 = arith.constant 1 : index
    %c2_114 = arith.constant 2 : index
    %134 = vector.load %arg4[%c1_113, %c2_114] : memref<20x20xf32, #tpu.memory_space<vmem>>, vector<1x16xf32>
    tpu.vector_store %arg4[%c1_113, %c2_114], %133 {strides = array<i32>} : memref<20x20xf32, #tpu.memory_space<vmem>>, vector<1x16xf32>,
    %135 = vector.extract_strided_slice %131 {offsets = [14, 0], sizes = [1, 16], strides = [1, 1]} : vector<16x16xf32> to vector<1x16xf32>
    %c18_115 = arith.constant 18 : index
    %c2_116 = arith.constant 2 : index
    %136 = vector.load %arg4[%c18_115, %c2_116] : memref<20x20xf32, #tpu.memory_space<vmem>>, vector<1x16xf32>
    tpu.vector_store %arg4[%c18_115, %c2_116], %135 {strides = array<i32>} : memref<20x20xf32, #tpu.memory_space<vmem>>, vector<1x16xf32>,
    %137 = vector.extract_strided_slice %131 {offsets = [2, 0], sizes = [1, 16], strides = [1, 1]} : vector<16x16xf32> to vector<1x16xf32>
    %c0_117 = arith.constant 0 : index
    %c2_118 = arith.constant 2 : index
    %138 = vector.load %arg4[%c0_117, %c2_118] : memref<20x20xf32, #tpu.memory_space<vmem>>, vector<1x16xf32>
    tpu.vector_store %arg4[%c0_117, %c2_118], %137 {strides = array<i32>} : memref<20x20xf32, #tpu.memory_space<vmem>>, vector<1x16xf32>,
    %139 = vector.extract_strided_slice %131 {offsets = [13, 0], sizes = [1, 16], strides = [1, 1]} : vector<16x16xf32> to vector<1x16xf32>
    %c19_119 = arith.constant 19 : index
    %c2_120 = arith.constant 2 : index
    %140 = vector.load %arg4[%c19_119, %c2_120] : memref<20x20xf32, #tpu.memory_space<vmem>>, vector<1x16xf32>
    tpu.vector_store %arg4[%c19_119, %c2_120], %139 {strides = array<i32>} : memref<20x20xf32, #tpu.memory_space<vmem>>, vector<1x16xf32>,
    %c0_121 = arith.constant 0 : index
    %c3_122 = arith.constant 3 : index
    %141 = vector.load %arg4[%c0_121, %c3_122] : memref<20x20xf32, #tpu.memory_space<vmem>>, vector<20x1xf32>
    %c0_123 = arith.constant 0 : index
    %c1_124 = arith.constant 1 : index
    %142 = vector.load %arg4[%c0_123, %c1_124] : memref<20x20xf32, #tpu.memory_space<vmem>>, vector<20x1xf32>
    tpu.vector_store %arg4[%c0_123, %c1_124], %141 {strides = array<i32>} : memref<20x20xf32, #tpu.memory_space<vmem>>, vector<20x1xf32>,
    %c0_125 = arith.constant 0 : index
    %c16_126 = arith.constant 16 : index
    %143 = vector.load %arg4[%c0_125, %c16_126] : memref<20x20xf32, #tpu.memory_space<vmem>>, vector<20x1xf32>
    %c0_127 = arith.constant 0 : index
    %c18_128 = arith.constant 18 : index
    %144 = vector.load %arg4[%c0_127, %c18_128] : memref<20x20xf32, #tpu.memory_space<vmem>>, vector<20x1xf32>
    tpu.vector_store %arg4[%c0_127, %c18_128], %143 {strides = array<i32>} : memref<20x20xf32, #tpu.memory_space<vmem>>, vector<20x1xf32>,
    %c0_129 = arith.constant 0 : index
    %c4_130 = arith.constant 4 : index
    %145 = vector.load %arg4[%c0_129, %c4_130] : memref<20x20xf32, #tpu.memory_space<vmem>>, vector<20x1xf32>
    %c0_131 = arith.constant 0 : index
    %c0_132 = arith.constant 0 : index
    %146 = vector.load %arg4[%c0_131, %c0_132] : memref<20x20xf32, #tpu.memory_space<vmem>>, vector<20x1xf32>
    tpu.vector_store %arg4[%c0_131, %c0_132], %145 {strides = array<i32>} : memref<20x20xf32, #tpu.memory_space<vmem>>, vector<20x1xf32>,
    %c0_133 = arith.constant 0 : index
    %c15_134 = arith.constant 15 : index
    %147 = vector.load %arg4[%c0_133, %c15_134] : memref<20x20xf32, #tpu.memory_space<vmem>>, vector<20x1xf32>
    %c0_135 = arith.constant 0 : index
    %c19_136 = arith.constant 19 : index
    %148 = vector.load %arg4[%c0_135, %c19_136] : memref<20x20xf32, #tpu.memory_space<vmem>>, vector<20x1xf32>
    tpu.vector_store %arg4[%c0_135, %c19_136], %147 {strides = array<i32>} : memref<20x20xf32, #tpu.memory_space<vmem>>, vector<20x1xf32>,
    %c0_137 = arith.constant 0 : index
    %c0_138 = arith.constant 0 : index
    %149 = vector.load %arg4[%c0_137, %c0_138] : memref<20x20xf32, #tpu.memory_space<vmem>>, vector<20x16xf32>
    %cst_139 = arith.constant 0.0782501251 : f32
    %150 = vector.broadcast %cst_139 : f32 to vector<20x16xf32>
    %151 = arith.mulf %150, %149 : vector<20x16xf32>
    %c0_140 = arith.constant 0 : index
    %c1_141 = arith.constant 1 : index
    %152 = vector.load %arg4[%c0_140, %c1_141] : memref<20x20xf32, #tpu.memory_space<vmem>>, vector<20x16xf32>
    %cst_142 = arith.constant 0.240408137 : f32
    %153 = vector.broadcast %cst_142 : f32 to vector<20x16xf32>
    %154 = arith.mulf %153, %152 : vector<20x16xf32>
    %155 = arith.addf %151, %154 : vector<20x16xf32>
    %c0_143 = arith.constant 0 : index
    %c2_144 = arith.constant 2 : index
    %156 = vector.load %arg4[%c0_143, %c2_144] : memref<20x20xf32, #tpu.memory_space<vmem>>, vector<20x16xf32>
    %cst_145 = arith.constant 0.362683475 : f32
    %157 = vector.broadcast %cst_145 : f32 to vector<20x16xf32>
    %158 = arith.mulf %157, %156 : vector<20x16xf32>
    %159 = arith.addf %155, %158 : vector<20x16xf32>
    %c0_146 = arith.constant 0 : index
    %c3_147 = arith.constant 3 : index
    %160 = vector.load %arg4[%c0_146, %c3_147] : memref<20x20xf32, #tpu.memory_space<vmem>>, vector<20x16xf32>
    %cst_148 = arith.constant 0.240408137 : f32
    %161 = vector.broadcast %cst_148 : f32 to vector<20x16xf32>
    %162 = arith.mulf %161, %160 : vector<20x16xf32>
    %163 = arith.addf %159, %162 : vector<20x16xf32>
    %c0_149 = arith.constant 0 : index
    %c4_150 = arith.constant 4 : index
    %164 = vector.load %arg4[%c0_149, %c4_150] : memref<20x20xf32, #tpu.memory_space<vmem>>, vector<20x16xf32>
    %cst_151 = arith.constant 0.0782501251 : f32
    %165 = vector.broadcast %cst_151 : f32 to vector<20x16xf32>
    %166 = arith.mulf %165, %164 : vector<20x16xf32>
    %167 = arith.addf %163, %166 : vector<20x16xf32>
    %168 = vector.extract_strided_slice %167 {offsets = [0, 0], sizes = [16, 16], strides = [1, 1]} : vector<20x16xf32> to vector<16x16xf32>
    %cst_152 = arith.constant 0.0782501251 : f32
    %169 = vector.broadcast %cst_152 : f32 to vector<16x16xf32>
    %170 = arith.mulf %169, %168 : vector<16x16xf32>
    %171 = vector.extract_strided_slice %167 {offsets = [1, 0], sizes = [16, 16], strides = [1, 1]} : vector<20x16xf32> to vector<16x16xf32>
    %cst_153 = arith.constant 0.240408137 : f32
    %172 = vector.broadcast %cst_153 : f32 to vector<16x16xf32>
    %173 = arith.mulf %172, %171 : vector<16x16xf32>
    %174 = arith.addf %170, %173 : vector<16x16xf32>
    %175 = vector.extract_strided_slice %167 {offsets = [2, 0], sizes = [16, 16], strides = [1, 1]} : vector<20x16xf32> to vector<16x16xf32>
    %cst_154 = arith.constant 0.362683475 : f32
    %176 = vector.broadcast %cst_154 : f32 to vector<16x16xf32>
    %177 = arith.mulf %176, %175 : vector<16x16xf32>
    %178 = arith.addf %174, %177 : vector<16x16xf32>
    %179 = vector.extract_strided_slice %167 {offsets = [3, 0], sizes = [16, 16], strides = [1, 1]} : vector<20x16xf32> to vector<16x16xf32>
    %cst_155 = arith.constant 0.240408137 : f32
    %180 = vector.broadcast %cst_155 : f32 to vector<16x16xf32>
    %181 = arith.mulf %180, %179 : vector<16x16xf32>
    %182 = arith.addf %178, %181 : vector<16x16xf32>
    %183 = vector.extract_strided_slice %167 {offsets = [4, 0], sizes = [16, 16], strides = [1, 1]} : vector<20x16xf32> to vector<16x16xf32>
    %cst_156 = arith.constant 0.0782501251 : f32
    %184 = vector.broadcast %cst_156 : f32 to vector<16x16xf32>
    %185 = arith.mulf %184, %183 : vector<16x16xf32>
    %186 = arith.addf %182, %185 : vector<16x16xf32>
    %cst_157 = arith.constant dense<0xFF800000> : vector<16xf32>
    %187 = vector.multi_reduction <maximumf>, %186, %cst_157 [1] : vector<16x16xf32> to vector<16xf32>
    %188 = vector.shape_cast %187 : vector<16xf32> to vector<16x1xf32>
    %cst_158 = arith.constant dense<0xFF800000> : vector<1xf32>
    %189 = vector.multi_reduction <maximumf>, %188, %cst_158 [0] : vector<16x1xf32> to vector<1xf32>
    %190 = vector.shape_cast %189 : vector<1xf32> to vector<1x1xf32>
    %cst_159 = arith.constant dense<0x7F800000> : vector<16xf32>
    %191 = vector.multi_reduction <minimumf>, %186, %cst_159 [1] : vector<16x16xf32> to vector<16xf32>
    %192 = vector.shape_cast %191 : vector<16xf32> to vector<16x1xf32>
    %cst_160 = arith.constant dense<0x7F800000> : vector<1xf32>
    %193 = vector.multi_reduction <minimumf>, %192, %cst_160 [0] : vector<16x1xf32> to vector<1xf32>
    %194 = vector.shape_cast %193 : vector<1xf32> to vector<1x1xf32>
    %195 = arith.subf %190, %194 : vector<1x1xf32>
    %cst_161 = arith.constant 9.99999971E-10 : f32
    %196 = vector.broadcast %cst_161 : f32 to vector<1x1xf32>
    %197 = arith.addf %195, %196 : vector<1x1xf32>
    %cst_162 = arith.constant 1.000000e+00 : f32
    %198 = vector.broadcast %cst_162 : f32 to vector<1x1xf32>
    %199 = arith.divf %198, %197 : vector<1x1xf32>
    %200 = vector.broadcast %194 : vector<1x1xf32> to vector<16x16xf32>
    %201 = arith.subf %186, %200 : vector<16x16xf32>
    %202 = vector.broadcast %199 : vector<1x1xf32> to vector<16x16xf32>
    %203 = arith.mulf %201, %202 : vector<16x16xf32>
    %204 = vector.shape_cast %203 : vector<16x16xf32> to vector<1x16x16xf32>
    %c0_163 = arith.constant 0 : index
    %c0_164 = arith.constant 0 : index
    %c0_165 = arith.constant 0 : index
    %205 = vector.load %arg3[%c0_163, %c0_164, %c0_165] : memref<1x16x16xf32, #tpu.memory_space<vmem>>, vector<1x16x16xf32>
    tpu.vector_store %arg3[%c0_163, %c0_164, %c0_165], %204 {strides = array<i32>} : memref<1x16x16xf32, #tpu.memory_space<vmem>>, vector<1x16x16xf32>,
    return
  }
  func.func @transform_0(%arg0: i32) -> (i32, i32, i32, i32) {
    %c0_i32 = arith.constant 0 : i32
    %c0_i32_0 = arith.constant 0 : i32
    %c0_i32_1 = arith.constant 0 : i32
    %c0_i32_2 = arith.constant 0 : i32
    return %arg0, %c0_i32, %c0_i32_0, %c0_i32_1 : i32, i32, i32, i32
  }
  func.func @transform_1(%arg0: i32) -> (i32, i32, i32, i32) {
    %c0_i32 = arith.constant 0 : i32
    %c0_i32_0 = arith.constant 0 : i32
    %c0_i32_1 = arith.constant 0 : i32
    %c0_i32_2 = arith.constant 0 : i32
    return %arg0, %c0_i32, %c0_i32_0, %c0_i32_1 : i32, i32, i32, i32
  }
  func.func @transform_2(%arg0: i32) -> (i32, i32, i32) {
    %c0_i32 = arith.constant 0 : i32
    %c0_i32_0 = arith.constant 0 : i32
    %c0_i32_1 = arith.constant 0 : i32
    return %arg0, %c0_i32, %c0_i32_0 : i32, i32, i32
  }
}

</mosaic_0001>

<llo_original>
// kernel: tpu_custom_call.1
$region0: #{tpu_custom_call.1}
  #allocation0 [shape = 'u32[]', space=smem, size = 0x4, offset = 0x4, fixed_abs, tag = 'smem constant byte address 0x4 - core index']
  #allocation1 [shape = 'u32[144,128]{1,0:T(1,128)}', space=vmem, size = 0x12000, scoped, tag = 'internal scratch']
  #allocation2 [shape = 'f32[20,20]{1,0:T(8,128)}', space=vmem, size = 0x3000, scoped, tag = 'scratch operand']
  %s0 = inlined_call_operand.hbm [shape: f32[2,4,16,16], index: 0, kind: input, shape index: {}]
  %s1 = inlined_call_operand.hbm [shape: f32[2,4,16,16], index: 1, kind: input, shape index: {}]
  %s2 = inlined_call_operand.hbm [shape: f32[2,16,16], index: 2, kind: output, shape index: {}]
  %s3 = sld [smem:[#allocation0]]
  $region49: #{tpu_custom_call.1} parent=0
    _
  %s5 = ssub.s32 1, %s3
  %s6 = scalar_select 0, %s5, %s3
  $region1: #{tpu_custom_call.1} parent=0
    #allocation3 [shape = 'u8[65536]{0}', space=vmem, size = 0x10000, scoped, tag = 'input window, operand 0']
    #allocation4 [shape = 's32[2]{0}', space=sflag, size = 0x8, scoped, tag = 'scoped memory for tpu_custom_call.1']
    #allocation5 [shape = 's32[2]{0}', space=sflag, size = 0x8, scoped, tag = 'scoped memory for tpu_custom_call.1']
    #allocation6 [shape = 'u8[65536]{0}', space=vmem, size = 0x10000, scoped, tag = 'input window, operand 1']
    #allocation7 [shape = 's32[2]{0}', space=sflag, size = 0x8, scoped, tag = 'scoped memory for tpu_custom_call.1']
    #allocation8 [shape = 'u8[16384]{0}', space=vmem, size = 0x4000, scoped, tag = 'output window, operand 0']
    %7 = vsyncpa [#allocation4], 0
    %s8 = scalar_lea.sflag [#allocation4], 1
    %9 = vsyncpa %s8, 0
    %10 = vsyncpa [#allocation7], 0
    %s11 = scalar_lea.sflag [#allocation7], 1
    %12 = vsyncpa %s11, 0
    %13 = vsyncpa [#allocation5], 0
    %s14 = scalar_lea.sflag [#allocation5], 1
    %15 = vsyncpa %s14, 0
    loop: start=0, step=1, limit=4
    $region2: #{tpu_custom_call.1} parent=1 // loop_pre_header
      _
    $region3: #{tpu_custom_call.1} parent=1 // loop_header
      %s17 = sphi 0, %s21
      %p18 = scmp.ge.s32.totalorder %s17, 4
      %s27 = sphi 0, %s29
      %s30 = sphi 0, %s27
      %s31 = sphi 0, %s30
      %s47 = sphi 0, %s31
      %s53 = sphi 0, %s55
      %s56 = sphi 0, %s53
      %s57 = sphi 0, %s56
      %s73 = sphi 0, %s57
      %s79 = sphi 0, %s81
      %s82 = sphi 0, %s79
      %s83 = sphi 0, %s82
      %s99 = sphi 0, %s83
    $region4: #{tpu_custom_call.1} parent=1 // loop_header_branch
      %20 = sbr.rel (%p18) target = $region8
    $region5: #{tpu_custom_call.1} parent=1 // loop_body
      %s22 = ssub.s32 %s17, 1
      %s23 = ssub.s32 %s17, 2
      %s24 = sadd.s32 %s17, 1
      %s25 = ssub.s32 %s17, %s24
      %p26 = scmp.eq.s32.totalorder %s25, 0
      %s28 = sadd.s32 %s27, 1
      %s29 = scalar_select %p26, %s27, %s28
      %p32 = pneg %p26
      %p33 = scmp.eq.s32.totalorder %s17, 1
      %p34 = por %p32, %p33
      %p35 = scmp.ne.s32.totalorder %s27, %s30
      %p36 = scmp.eq.s32.totalorder %s17, 0
      %p37 = por %p35, %p36
      %p38 = scmp.ne.s32.totalorder %s27, %s30
      %p39 = scmp.eq.s32.totalorder %s22, 1
      %p40 = por %p38, %p39
      %p41 = scmp.ne.s32.totalorder %s30, %s31
      %p42 = scmp.eq.s32.totalorder %s22, 0
      %p43 = por %p41, %p42
      %p44 = scmp.ne.s32.totalorder %s30, %s31
      %p45 = scmp.eq.s32.totalorder %s23, 1
      %p46 = por %p44, %p45
      %p48 = scmp.ne.s32.totalorder %s31, %s47
      %p49 = scmp.eq.s32.totalorder %s23, 0
      %p50 = por %p48, %p49
      %s51 = ssub.s32 %s17, %s24
      %p52 = scmp.eq.s32.totalorder %s51, 0
      %s54 = sadd.s32 %s53, 1
      %s55 = scalar_select %p52, %s53, %s54
      %p58 = pneg %p52
      %p59 = scmp.eq.s32.totalorder %s17, 1
      %p60 = por %p58, %p59
      %p61 = scmp.ne.s32.totalorder %s53, %s56
      %p62 = scmp.eq.s32.totalorder %s17, 0
      %p63 = por %p61, %p62
      %p64 = scmp.ne.s32.totalorder %s53, %s56
      %p65 = scmp.eq.s32.totalorder %s22, 1
      %p66 = por %p64, %p65
      %p67 = scmp.ne.s32.totalorder %s56, %s57
      %p68 = scmp.eq.s32.totalorder %s22, 0
      %p69 = por %p67, %p68
      %p70 = scmp.ne.s32.totalorder %s56, %s57
      %p71 = scmp.eq.s32.totalorder %s23, 1
      %p72 = por %p70, %p71
      %p74 = scmp.ne.s32.totalorder %s57, %s73
      %p75 = scmp.eq.s32.totalorder %s23, 0
      %p76 = por %p74, %p75
      %s77 = ssub.s32 %s17, %s24
      %p78 = scmp.eq.s32.totalorder %s77, 0
      %s80 = sadd.s32 %s79, 1
      %s81 = scalar_select %p78, %s79, %s80
      %p84 = pneg %p78
      %p85 = scmp.eq.s32.totalorder %s17, 1
      %p86 = por %p84, %p85
      %p87 = scmp.ne.s32.totalorder %s79, %s82
      %p88 = scmp.eq.s32.totalorder %s17, 0
      %p89 = por %p87, %p88
      %p90 = scmp.ne.s32.totalorder %s79, %s82
      %p91 = scmp.eq.s32.totalorder %s22, 1
      %p92 = por %p90, %p91
      %p93 = scmp.ne.s32.totalorder %s82, %s83
      %p94 = scmp.eq.s32.totalorder %s22, 0
      %p95 = por %p93, %p94
      %p96 = scmp.ne.s32.totalorder %s82, %s83
      %p97 = scmp.eq.s32.totalorder %s23, 1
      %p98 = por %p96, %p97
      %p100 = scmp.ne.s32.totalorder %s83, %s99
      %p101 = scmp.eq.s32.totalorder %s23, 0
      %p102 = por %p100, %p101
      %p103 = scmp.le.s32.totalorder 1, %s17
      %p104 = scmp.lt.s32.totalorder %s17, 3
      %p105 = pnand %p103, %p104
      %p106 = pneg %p105
      // Predicated region
      $region9: #{tpu_custom_call.1} parent=5 // pred_check
        _
      $region10: #{tpu_custom_call.1} parent=5 // pred_check_branch
        %108 = sbr.rel (%p105) target = $region12
      $region11: #{tpu_custom_call.1} parent=5 // pred_region
        %s109 = ssub.s32 %s17, 1
      $region12: #{tpu_custom_call.1} parent=5 // pred_fallthru
        _
      %p110 = scmp.lt.s32.totalorder %s17, 2
      // Predicated region
      $region13: #{tpu_custom_call.1} parent=5 // pred_check
        %p111 = pneg %p110
      $region14: #{tpu_custom_call.1} parent=5 // pred_check_branch
        %113 = sbr.rel (%p111) target = $region16
      $region15: #{tpu_custom_call.1} parent=5 // pred_region
        // Predicated region
        $region17: #{tpu_custom_call.1} parent=15 // pred_check
          %p114 = pneg %p37
        $region18: #{tpu_custom_call.1} parent=15 // pred_check_branch
          %116 = sbr.rel (%p114) target = $region20
        $region19: #{tpu_custom_call.1} parent=15 // pred_region
          %s117 = sand.u32 %s27, 1
          %s118 = scalar_lea.sflag [#allocation4], %s117
          %s119 = sand.u32 %s27, 1
          %s120 = smul.addr %s119, 64
          %s121 = scalar_lea.vmem [#allocation3], %s120
          %s123 = ssub.s32 1024, 1024
          %124 = vsyncadd %s118, %s123
          %s125 = smul.addr %s17, 8
          %s126 = smul.addr %s125, 128
          %s127 = scalar_lea.hbm %s0, %s126
          %s128 = sshll.u32 %s121, 4
          %s129 = int_to_ptr.vmem [resolvable:$true] %s128
          %134 = dma.hbm_to_vmem [thread:$0]  %s127, 1024, %s129, %s118, 128, 128, 8
        $region20: #{tpu_custom_call.1} parent=15 // pred_fallthru
          _
        // Predicated region
        $region21: #{tpu_custom_call.1} parent=15 // pred_check
          %p135 = pneg %p63
        $region22: #{tpu_custom_call.1} parent=15 // pred_check_branch
          %137 = sbr.rel (%p135) target = $region24
        $region23: #{tpu_custom_call.1} parent=15 // pred_region
          %s138 = sand.u32 %s53, 1
          %s139 = scalar_lea.sflag [#allocation7], %s138
          %s140 = sand.u32 %s53, 1
          %s141 = smul.addr %s140, 64
          %s142 = scalar_lea.vmem [#allocation6], %s141
          %s144 = ssub.s32 1024, 1024
          %145 = vsyncadd %s139, %s144
          %s146 = smul.addr %s17, 8
          %s147 = smul.addr %s146, 128
          %s148 = scalar_lea.hbm %s1, %s147
          %s149 = sshll.u32 %s142, 4
          %s150 = int_to_ptr.vmem [resolvable:$true] %s149
          %155 = dma.hbm_to_vmem [thread:$0]  %s148, 1024, %s150, %s139, 128, 128, 8
        $region24: #{tpu_custom_call.1} parent=15 // pred_fallthru
          _
      $region16: #{tpu_custom_call.1} parent=5 // pred_fallthru
        _
      %p156 = scmp.le.s32.totalorder 1, %s17
      %p157 = scmp.lt.s32.totalorder %s17, 3
      %p158 = pnand %p156, %p157
      %p159 = pneg %p158
      // Predicated region
      $region25: #{tpu_custom_call.1} parent=5 // pred_check
        _
      $region26: #{tpu_custom_call.1} parent=5 // pred_check_branch
        %161 = sbr.rel (%p158) target = $region28
      $region27: #{tpu_custom_call.1} parent=5 // pred_region
        %s162 = ssub.s32 %s17, 1
        %s163 = sand.u32 %s30, 1
        %s164 = scalar_lea.sflag [#allocation4], %s163
        %s165 = sand.u32 %s30, 1
        %s166 = smul.addr %s165, 64
        %s167 = scalar_lea.vmem [#allocation3], %s166
        // Predicated region
        $region29: #{tpu_custom_call.1} parent=27 // pred_check
          %p168 = pneg %p43
        $region30: #{tpu_custom_call.1} parent=27 // pred_check_branch
          %170 = sbr.rel (%p168) target = $region32
        $region31: #{tpu_custom_call.1} parent=27 // pred_region
          %171 = dma.done %s164, 1024
        $region32: #{tpu_custom_call.1} parent=27 // pred_fallthru
          _
        %s172 = sand.u32 %s56, 1
        %s173 = scalar_lea.sflag [#allocation7], %s172
        %s174 = sand.u32 %s56, 1
        %s175 = smul.addr %s174, 64
        %s176 = scalar_lea.vmem [#allocation6], %s175
        // Predicated region
        $region33: #{tpu_custom_call.1} parent=27 // pred_check
          %p177 = pneg %p69
        $region34: #{tpu_custom_call.1} parent=27 // pred_check_branch
          %179 = sbr.rel (%p177) target = $region36
        $region35: #{tpu_custom_call.1} parent=27 // pred_region
          %180 = dma.done %s173, 1024
        $region36: #{tpu_custom_call.1} parent=27 // pred_fallthru
          _
        %s181 = sand.u32 %s30, 1
        %s182 = scalar_lea.sflag [#allocation4], %s181
        %s183 = sand.u32 %s30, 1
        %s184 = smul.addr %s183, 64
        %s185 = scalar_lea.vmem [#allocation3], %s184
        %p186 = pneg %p43
        %p187 = pneg %p40
        %s188 = sand.u32 %s56, 1
        %s189 = scalar_lea.sflag [#allocation7], %s188
        %s190 = sand.u32 %s56, 1
        %s191 = smul.addr %s190, 64
        %s192 = scalar_lea.vmem [#allocation6], %s191
        %p193 = pneg %p69
        %p194 = pneg %p66
        %p195 = pneg %p95
        %p196 = pneg %p92
        %s197 = sand.u32 %s82, 1
        %s198 = scalar_lea.sflag [#allocation5], %s197
        %s199 = sand.u32 %s82, 1
        %s200 = smul.addr %s199, 16
        %s201 = scalar_lea.vmem [#allocation8], %s200
        %v202 = vld [vmem:[%s176] sm:$0xff]
        %v203 = vld [vmem:[%s176 + $0x8] sm:$0xff]
        %v204 = vld [vmem:[%s176 + $0x10] sm:$0xff]
        %v205 = vld [vmem:[%s176 + $0x18] sm:$0xff]
        %v206 = vld [vmem:[%s176 + $0x20] sm:$0xff]
        %v207 = vld [vmem:[%s176 + $0x28] sm:$0xff]
        %v208 = vld [vmem:[%s176 + $0x30] sm:$0xff]
        %v209 = vld [vmem:[%s176 + $0x38] sm:$0xff]
        %v210 = vld [vmem:[%s167] sm:$0xff]
        %v211 = vld [vmem:[%s167 + $0x8] sm:$0xff]
        %v212 = vld [vmem:[%s167 + $0x10] sm:$0xff]
        %v213 = vld [vmem:[%s167 + $0x18] sm:$0xff]
        %v214 = vld [vmem:[%s167 + $0x20] sm:$0xff]
        %v215 = vld [vmem:[%s167 + $0x28] sm:$0xff]
        %v216 = vld [vmem:[%s167 + $0x30] sm:$0xff]
        %v217 = vld [vmem:[%s167 + $0x38] sm:$0xff]
        %v218 = vsub.f32 %v202, %v210
        %v219 = vsub.f32 %v203, %v211
        %v220 = vsub.f32 %v204, %v212
        %v221 = vsub.f32 %v205, %v213
        %v222 = vsub.f32 %v206, %v214
        %v223 = vsub.f32 %v207, %v215
        %v224 = vsub.f32 %v208, %v216
        %v225 = vsub.f32 %v209, %v217
        %v226 = vand.u32 2147483647, %v218
        %v227 = vand.u32 2147483647, %v219
        %v228 = vand.u32 2147483647, %v220
        %v229 = vand.u32 2147483647, %v221
        %v230 = vand.u32 2147483647, %v222
        %v231 = vand.u32 2147483647, %v223
        %v232 = vand.u32 2147483647, %v224
        %v233 = vand.u32 2147483647, %v225
        %vm234 = vcmask 130048
        %v235 = vsel %vm234, %v226, 0.0
        %v236 = vsel %vm234, %v228, 0.0
        %v237 = vadd.f32 %v235, %v236
        %v238 = vsel %vm234, %v230, 0.0
        %v239 = vadd.f32 %v237, %v238
        %v240 = vsel %vm234, %v232, 0.0
        %v241 = vadd.f32 %v239, %v240
        %v242 = vsel %vm234, %v227, 0.0
        %v243 = vsel %vm234, %v229, 0.0
        %v244 = vadd.f32 %v242, %v243
        %v245 = vsel %vm234, %v231, 0.0
        %v246 = vadd.f32 %v244, %v245
        %v247 = vsel %vm234, %v233, 0.0
        %v248 = vadd.f32 %v246, %v247
        %v249 = vmul.f32 %v241, 1.5
        %v250 = vmul.f32 %v248, 1.5
        %253 = vrot.lane.b32.xlu0 %v249, 1
        %v254 = vpop.permute.xlu0 %253
        %255 = vrot.lane.b32.xlu0 %v250, 1
        %v256 = vpop.permute.xlu0 %255
        %vm259 = vcmask 138248
        %260 = vst.msk [vmem:[#allocation2 + $0x1] sm:$0xff] %vm259, %v254
        %261 = vst.msk [vmem:[#allocation2 + $0x9] sm:$0xff] %vm259, %v256
        %vm262 = vcmask 132105
        %263 = vst.msk [vmem:[#allocation2 - $0x1] sm:$0x2] %vm262, %v254
        %vm264 = vcmask 137230
        %265 = vst.msk [vmem:[#allocation2 + $0xb] sm:$0x40] %vm264, %v256
        %v266 = vld [vmem:[#allocation2] sm:$0xff]
        %v267 = vld [vmem:[#allocation2 + $0x8] sm:$0xff]
        %v268 = vld [vmem:[#allocation2 + $0x10] sm:$0x3]
        %272 = vrot.lane.b32.xlu0 %v266, 126
        %v273 = vpop.permute.xlu0 %272
        %274 = vrot.lane.b32.xlu0 %v267, 126
        %v275 = vpop.permute.xlu0 %274
        %276 = vrot.lane.b32.xlu0 %v268, 126
        %v277 = vpop.permute.xlu0 %276
        %vm281 = vcmask 7168
        %282 = vst.msk [vmem:[#allocation2] sm:$0xff] %vm281, %v273
        %283 = vst.msk [vmem:[#allocation2 + $0x8] sm:$0xff] %vm281, %v275
        %vm284 = vcmask 1024
        %285 = vst.msk [vmem:[#allocation2 + $0x10] sm:$0x3] %vm284, %v277
        %v286 = vld [vmem:[#allocation2] sm:$0xff]
        %v287 = vld [vmem:[#allocation2 + $0x8] sm:$0xff]
        %v288 = vld [vmem:[#allocation2 + $0x10] sm:$0x3]
        %292 = vrot.lane.b32.xlu0 %v286, 2
        %v293 = vpop.permute.xlu0 %292
        %294 = vrot.lane.b32.xlu0 %v287, 2
        %v295 = vpop.permute.xlu0 %294
        %296 = vrot.lane.b32.xlu0 %v288, 2
        %v297 = vpop.permute.xlu0 %296
        %vm301 = vcmask 146568
        %302 = vst.msk [vmem:[#allocation2] sm:$0xff] %vm301, %v293
        %303 = vst.msk [vmem:[#allocation2 + $0x8] sm:$0xff] %vm301, %v295
        %vm304 = vcmask 140424
        %305 = vst.msk [vmem:[#allocation2 + $0x10] sm:$0x3] %vm304, %v297
        %v306 = vld [vmem:[#allocation2] sm:$0xff]
        %v307 = vld [vmem:[#allocation2 + $0x8] sm:$0xff]
        %v308 = vld [vmem:[#allocation2 + $0x10] sm:$0x3]
        %v309 = vmul.f32 %v306, 0.25022104
        %v310 = vmul.f32 %v307, 0.25022104
        %v311 = vmul.f32 %v308, 0.25022104
        %v312 = vmul.f32 %v306, 0.49955794
        %v313 = vmul.f32 %v307, 0.49955794
        %v314 = vmul.f32 %v308, 0.49955794
        %318 = vrot.lane.b32.xlu0 %v312, 127
        %v319 = vpop.permute.xlu0 %318
        %320 = vrot.lane.b32.xlu0 %v313, 127
        %v321 = vpop.permute.xlu0 %320
        %322 = vrot.lane.b32.xlu0 %v314, 127
        %v323 = vpop.permute.xlu0 %322
        %v327 = vadd.f32 %v309, %v319
        %v328 = vadd.f32 %v310, %v321
        %v329 = vadd.f32 %v311, %v323
        %333 = vrot.lane.b32.xlu0 %v309, 126
        %v334 = vpop.permute.xlu0 %333
        %335 = vrot.lane.b32.xlu0 %v310, 126
        %v336 = vpop.permute.xlu0 %335
        %337 = vrot.lane.b32.xlu0 %v311, 126
        %v338 = vpop.permute.xlu0 %337
        %v342 = vadd.f32 %v327, %v334
        %v343 = vadd.f32 %v328, %v336
        %v344 = vadd.f32 %v329, %v338
        %v345 = vmul.f32 %v342, 0.25022104
        %v346 = vmul.f32 %v343, 0.25022104
        %v347 = vmul.f32 %v342, 0.49955794
        %v348 = vmul.f32 %v343, 0.49955794
        %v349 = vmul.f32 %v344, 0.49955794
        %vm353 = vcmask 1046528
        %v354 = vrot.slane %v347, 1
        %v355 = vrot.slane %v348, 1
        %v356 = vsel %vm353, %v354, %v355
        %v357 = vrot.slane %v349, 1
        %v358 = vsel %vm353, %v355, %v357
        %v361 = vadd.f32 %v345, %v356
        %v362 = vadd.f32 %v346, %v358
        %v363 = vmul.f32 %v344, 0.25022104
        %vm367 = vcmask 1045504
        %v368 = vrot.slane %v345, 2
        %v369 = vrot.slane %v346, 2
        %v370 = vsel %vm367, %v368, %v369
        %v371 = vrot.slane %v363, 2
        %v372 = vsel %vm367, %v369, %v371
        %v375 = vadd.f32 %v361, %v370
        %v376 = vadd.f32 %v362, %v372
        %379 = vrot.lane.b32.xlu0 %v375, 1
        %v380 = vpop.permute.xlu0 %379
        %381 = vrot.lane.b32.xlu0 %v376, 1
        %v382 = vpop.permute.xlu0 %381
        %385 = vst.msk [vmem:[#allocation2 + $0x1] sm:$0xff] %vm259, %v380
        %386 = vst.msk [vmem:[#allocation2 + $0x9] sm:$0xff] %vm259, %v382
        %387 = vst.msk [vmem:[#allocation2 - $0x1] sm:$0x2] %vm262, %v380
        %388 = vst.msk [vmem:[#allocation2 + $0xb] sm:$0x40] %vm264, %v382
        %v389 = vld [vmem:[#allocation2] sm:$0xff]
        %v390 = vld [vmem:[#allocation2 + $0x8] sm:$0xff]
        %v391 = vld [vmem:[#allocation2 + $0x10] sm:$0x3]
        %395 = vrot.lane.b32.xlu0 %v389, 126
        %v396 = vpop.permute.xlu0 %395
        %397 = vrot.lane.b32.xlu0 %v390, 126
        %v398 = vpop.permute.xlu0 %397
        %399 = vrot.lane.b32.xlu0 %v391, 126
        %v400 = vpop.permute.xlu0 %399
        %404 = vst.msk [vmem:[#allocation2] sm:$0xff] %vm281, %v396
        %405 = vst.msk [vmem:[#allocation2 + $0x8] sm:$0xff] %vm281, %v398
        %406 = vst.msk [vmem:[#allocation2 + $0x10] sm:$0x3] %vm284, %v400
        %v407 = vld [vmem:[#allocation2] sm:$0xff]
        %v408 = vld [vmem:[#allocation2 + $0x8] sm:$0xff]
        %v409 = vld [vmem:[#allocation2 + $0x10] sm:$0x3]
        %413 = vrot.lane.b32.xlu0 %v407, 2
        %v414 = vpop.permute.xlu0 %413
        %415 = vrot.lane.b32.xlu0 %v408, 2
        %v416 = vpop.permute.xlu0 %415
        %417 = vrot.lane.b32.xlu0 %v409, 2
        %v418 = vpop.permute.xlu0 %417
        %422 = vst.msk [vmem:[#allocation2] sm:$0xff] %vm301, %v414
        %423 = vst.msk [vmem:[#allocation2 + $0x8] sm:$0xff] %vm301, %v416
        %424 = vst.msk [vmem:[#allocation2 + $0x10] sm:$0x3] %vm304, %v418
        %v425 = vld [vmem:[#allocation2] sm:$0xff]
        %v426 = vld [vmem:[#allocation2 + $0x8] sm:$0xff]
        %v427 = vld [vmem:[#allocation2 + $0x10] sm:$0x3]
        %431 = vrot.lane.b32.xlu0 %v425, 127
        %v432 = vpop.permute.xlu0 %431
        %433 = vrot.lane.b32.xlu0 %v426, 127
        %v434 = vpop.permute.xlu0 %433
        %435 = vrot.lane.b32.xlu0 %v427, 127
        %v436 = vpop.permute.xlu0 %435
        %v440 = vmax.f32 %v425, %v432
        %v441 = vmax.f32 %v426, %v434
        %v442 = vmax.f32 %v427, %v436
        %443 = vrot.lane.b32.xlu0 %v425, 126
        %v444 = vpop.permute.xlu0 %443
        %445 = vrot.lane.b32.xlu0 %v426, 126
        %v446 = vpop.permute.xlu0 %445
        %447 = vrot.lane.b32.xlu0 %v427, 126
        %v448 = vpop.permute.xlu0 %447
        %v452 = vmax.f32 %v440, %v444
        %v453 = vmax.f32 %v441, %v446
        %v454 = vmax.f32 %v442, %v448
        %v458 = vrot.slane %v452, 1
        %v459 = vrot.slane %v453, 1
        %v460 = vsel %vm353, %v458, %v459
        %v461 = vrot.slane %v454, 1
        %v462 = vsel %vm353, %v459, %v461
        %v465 = vmax.f32 %v452, %v460
        %v466 = vmax.f32 %v453, %v462
        %v467 = vrot.slane %v452, 2
        %v468 = vrot.slane %v453, 2
        %v469 = vsel %vm367, %v467, %v468
        %v470 = vrot.slane %v454, 2
        %v471 = vsel %vm367, %v468, %v470
        %v474 = vmax.f32 %v465, %v469
        %v475 = vmax.f32 %v466, %v471
        %478 = vrot.lane.b32.xlu0 %v474, 2
        %v479 = vpop.permute.xlu0 %478
        %480 = vrot.lane.b32.xlu0 %v475, 2
        %v481 = vpop.permute.xlu0 %480
        %vm484 = vcmask 146448
        %485 = vst.msk [vmem:[#allocation2 + $0x2] sm:$0xff] %vm484, %v479
        %486 = vst.msk [vmem:[#allocation2 + $0xa] sm:$0xff] %vm484, %v481
        %vm487 = vcmask 140305
        %488 = vst.msk [vmem:[#allocation2] sm:$0x2] %vm487, %v479
        %vm489 = vcmask 145430
        %490 = vst.msk [vmem:[#allocation2 + $0xc] sm:$0x40] %vm489, %v481
        %vm491 = vcmask 141330
        %492 = vst.msk [vmem:[#allocation2 - $0x2] sm:$0x4] %vm491, %v479
        %vm493 = vcmask 144405
        %494 = vst.msk [vmem:[#allocation2 + $0xe] sm:$0x20] %vm493, %v481
        %v495 = vld [vmem:[#allocation2] sm:$0xff]
        %v496 = vld [vmem:[#allocation2 + $0x8] sm:$0xff]
        %v497 = vld [vmem:[#allocation2 + $0x10] sm:$0xf]
        %501 = vrot.lane.b32.xlu0 %v495, 126
        %v502 = vpop.permute.xlu0 %501
        %503 = vrot.lane.b32.xlu0 %v496, 126
        %v504 = vpop.permute.xlu0 %503
        %505 = vrot.lane.b32.xlu0 %v497, 126
        %v506 = vpop.permute.xlu0 %505
        %vm510 = vcmask 15368
        %511 = vst.msk [vmem:[#allocation2] sm:$0xff] %vm510, %v502
        %512 = vst.msk [vmem:[#allocation2 + $0x8] sm:$0xff] %vm510, %v504
        %vm513 = vcmask 11272
        %514 = vst.msk [vmem:[#allocation2 + $0x10] sm:$0xf] %vm513, %v506
        %v515 = vld [vmem:[#allocation2] sm:$0xff]
        %v516 = vld [vmem:[#allocation2 + $0x8] sm:$0xff]
        %v517 = vld [vmem:[#allocation2 + $0x10] sm:$0xf]
        %521 = vrot.lane.b32.xlu0 %v515, 2
        %v522 = vpop.permute.xlu0 %521
        %523 = vrot.lane.b32.xlu0 %v516, 2
        %v524 = vpop.permute.xlu0 %523
        %525 = vrot.lane.b32.xlu0 %v517, 2
        %v526 = vpop.permute.xlu0 %525
        %vm530 = vcmask 154768
        %531 = vst.msk [vmem:[#allocation2] sm:$0xff] %vm530, %v522
        %532 = vst.msk [vmem:[#allocation2 + $0x8] sm:$0xff] %vm530, %v524
        %vm533 = vcmask 150672
        %534 = vst.msk [vmem:[#allocation2 + $0x10] sm:$0xf] %vm533, %v526
        %v535 = vld [vmem:[#allocation2] sm:$0xff]
        %v536 = vld [vmem:[#allocation2 + $0x8] sm:$0xff]
        %v537 = vld [vmem:[#allocation2 + $0x10] sm:$0xf]
        %541 = vrot.lane.b32.xlu0 %v535, 124
        %v542 = vpop.permute.xlu0 %541
        %543 = vrot.lane.b32.xlu0 %v536, 124
        %v544 = vpop.permute.xlu0 %543
        %545 = vrot.lane.b32.xlu0 %v537, 124
        %v546 = vpop.permute.xlu0 %545
        %550 = vst.msk [vmem:[#allocation2] sm:$0xff] %vm281, %v542
        %551 = vst.msk [vmem:[#allocation2 + $0x8] sm:$0xff] %vm281, %v544
        %vm552 = vcmask 3072
        %553 = vst.msk [vmem:[#allocation2 + $0x10] sm:$0xf] %vm552, %v546
        %v554 = vld [vmem:[#allocation2] sm:$0xff]
        %v555 = vld [vmem:[#allocation2 + $0x8] sm:$0xff]
        %v556 = vld [vmem:[#allocation2 + $0x10] sm:$0xf]
        %560 = vrot.lane.b32.xlu0 %v554, 4
        %v561 = vpop.permute.xlu0 %560
        %562 = vrot.lane.b32.xlu0 %v555, 4
        %v563 = vpop.permute.xlu0 %562
        %564 = vrot.lane.b32.xlu0 %v556, 4
        %v565 = vpop.permute.xlu0 %564
        %vm569 = vcmask 162968
        %570 = vst.msk [vmem:[#allocation2] sm:$0xff] %vm569, %v561
        %571 = vst.msk [vmem:[#allocation2 + $0x8] sm:$0xff] %vm569, %v563
        %vm572 = vcmask 158872
        %573 = vst.msk [vmem:[#allocation2 + $0x10] sm:$0xf] %vm572, %v565
        %v574 = vld [vmem:[#allocation2] sm:$0xff]
        %v575 = vld [vmem:[#allocation2 + $0x8] sm:$0xff]
        %v576 = vld [vmem:[#allocation2 + $0x10] sm:$0xf]
        %v577 = vmul.f32 %v574, 0.078250125
        %v578 = vmul.f32 %v575, 0.078250125
        %v579 = vmul.f32 %v576, 0.078250125
        %v580 = vmul.f32 %v574, 0.24040814
        %v581 = vmul.f32 %v575, 0.24040814
        %v582 = vmul.f32 %v576, 0.24040814
        %586 = vrot.lane.b32.xlu0 %v580, 127
        %v587 = vpop.permute.xlu0 %586
        %588 = vrot.lane.b32.xlu0 %v581, 127
        %v589 = vpop.permute.xlu0 %588
        %590 = vrot.lane.b32.xlu0 %v582, 127
        %v591 = vpop.permute.xlu0 %590
        %v595 = vadd.f32 %v577, %v587
        %v596 = vadd.f32 %v578, %v589
        %v597 = vadd.f32 %v579, %v591
        %v598 = vmul.f32 %v574, 0.36268348
        %v599 = vmul.f32 %v575, 0.36268348
        %v600 = vmul.f32 %v576, 0.36268348
        %604 = vrot.lane.b32.xlu0 %v598, 126
        %v605 = vpop.permute.xlu0 %604
        %606 = vrot.lane.b32.xlu0 %v599, 126
        %v607 = vpop.permute.xlu0 %606
        %608 = vrot.lane.b32.xlu0 %v600, 126
        %v609 = vpop.permute.xlu0 %608
        %v613 = vadd.f32 %v595, %v605
        %v614 = vadd.f32 %v596, %v607
        %v615 = vadd.f32 %v597, %v609
        %616 = vrot.lane.b32.xlu0 %v580, 125
        %v617 = vpop.permute.xlu0 %616
        %618 = vrot.lane.b32.xlu0 %v581, 125
        %v619 = vpop.permute.xlu0 %618
        %620 = vrot.lane.b32.xlu0 %v582, 125
        %v621 = vpop.permute.xlu0 %620
        %v625 = vadd.f32 %v613, %v617
        %v626 = vadd.f32 %v614, %v619
        %v627 = vadd.f32 %v615, %v621
        %631 = vrot.lane.b32.xlu0 %v577, 124
        %v632 = vpop.permute.xlu0 %631
        %633 = vrot.lane.b32.xlu0 %v578, 124
        %v634 = vpop.permute.xlu0 %633
        %635 = vrot.lane.b32.xlu0 %v579, 124
        %v636 = vpop.permute.xlu0 %635
        %v640 = vadd.f32 %v625, %v632
        %v641 = vadd.f32 %v626, %v634
        %v642 = vadd.f32 %v627, %v636
        %v643 = vmul.f32 %v640, 0.078250125
        %v644 = vmul.f32 %v641, 0.078250125
        %v645 = vmul.f32 %v640, 0.24040814
        %v646 = vmul.f32 %v641, 0.24040814
        %v647 = vmul.f32 %v642, 0.24040814
        %v651 = vrot.slane %v645, 1
        %v652 = vrot.slane %v646, 1
        %v653 = vsel %vm353, %v651, %v652
        %v654 = vrot.slane %v647, 1
        %v655 = vsel %vm353, %v652, %v654
        %v658 = vadd.f32 %v643, %v653
        %v659 = vadd.f32 %v644, %v655
        %v660 = vmul.f32 %v640, 0.36268348
        %v661 = vmul.f32 %v641, 0.36268348
        %v662 = vmul.f32 %v642, 0.36268348
        %v666 = vrot.slane %v660, 2
        %v667 = vrot.slane %v661, 2
        %v668 = vsel %vm367, %v666, %v667
        %v669 = vrot.slane %v662, 2
        %v670 = vsel %vm367, %v667, %v669
        %v673 = vadd.f32 %v658, %v668
        %v674 = vadd.f32 %v659, %v670
        %vm675 = vcmask 1044480
        %v676 = vrot.slane %v645, 3
        %v677 = vrot.slane %v646, 3
        %v678 = vsel %vm675, %v676, %v677
        %v679 = vrot.slane %v647, 3
        %v680 = vsel %vm675, %v677, %v679
        %v683 = vadd.f32 %v673, %v678
        %v684 = vadd.f32 %v674, %v680
        %v685 = vmul.f32 %v642, 0.078250125
        %vm689 = vcmask 1043456
        %v690 = vrot.slane %v643, 4
        %v691 = vrot.slane %v644, 4
        %v692 = vsel %vm689, %v690, %v691
        %v693 = vrot.slane %v685, 4
        %v694 = vsel %vm689, %v691, %v693
        %v697 = vadd.f32 %v683, %v692
        %v698 = vadd.f32 %v684, %v694
        %701 = vrot.lane.b32.xlu0 %v697, 1
        %v702 = vpop.permute.xlu0 %701
        %703 = vrot.lane.b32.xlu0 %v698, 1
        %v704 = vpop.permute.xlu0 %703
        %707 = vst.msk [vmem:[#allocation2 + $0x1] sm:$0xff] %vm259, %v702
        %708 = vst.msk [vmem:[#allocation2 + $0x9] sm:$0xff] %vm259, %v704
        %709 = vst.msk [vmem:[#allocation2 - $0x1] sm:$0x2] %vm262, %v702
        %710 = vst.msk [vmem:[#allocation2 + $0xb] sm:$0x40] %vm264, %v704
        %v711 = vld [vmem:[#allocation2] sm:$0xff]
        %v712 = vld [vmem:[#allocation2 + $0x8] sm:$0xff]
        %v713 = vld [vmem:[#allocation2 + $0x10] sm:$0x3]
        %717 = vrot.lane.b32.xlu0 %v711, 126
        %v718 = vpop.permute.xlu0 %717
        %719 = vrot.lane.b32.xlu0 %v712, 126
        %v720 = vpop.permute.xlu0 %719
        %721 = vrot.lane.b32.xlu0 %v713, 126
        %v722 = vpop.permute.xlu0 %721
        %726 = vst.msk [vmem:[#allocation2] sm:$0xff] %vm281, %v718
        %727 = vst.msk [vmem:[#allocation2 + $0x8] sm:$0xff] %vm281, %v720
        %728 = vst.msk [vmem:[#allocation2 + $0x10] sm:$0x3] %vm284, %v722
        %v729 = vld [vmem:[#allocation2] sm:$0xff]
        %v730 = vld [vmem:[#allocation2 + $0x8] sm:$0xff]
        %v731 = vld [vmem:[#allocation2 + $0x10] sm:$0x3]
        %735 = vrot.lane.b32.xlu0 %v729, 2
        %v736 = vpop.permute.xlu0 %735
        %737 = vrot.lane.b32.xlu0 %v730, 2
        %v738 = vpop.permute.xlu0 %737
        %739 = vrot.lane.b32.xlu0 %v731, 2
        %v740 = vpop.permute.xlu0 %739
        %744 = vst.msk [vmem:[#allocation2] sm:$0xff] %vm301, %v736
        %745 = vst.msk [vmem:[#allocation2 + $0x8] sm:$0xff] %vm301, %v738
        %746 = vst.msk [vmem:[#allocation2 + $0x10] sm:$0x3] %vm304, %v740
        %v747 = vld [vmem:[#allocation2] sm:$0xff]
        %v748 = vld [vmem:[#allocation2 + $0x8] sm:$0xff]
        %v749 = vld [vmem:[#allocation2 + $0x10] sm:$0x3]
        %753 = vrot.lane.b32.xlu0 %v747, 127
        %v754 = vpop.permute.xlu0 %753
        %755 = vrot.lane.b32.xlu0 %v748, 127
        %v756 = vpop.permute.xlu0 %755
        %757 = vrot.lane.b32.xlu0 %v749, 127
        %v758 = vpop.permute.xlu0 %757
        %v762 = vmax.f32 %v747, %v754
        %v763 = vmax.f32 %v748, %v756
        %v764 = vmax.f32 %v749, %v758
        %765 = vrot.lane.b32.xlu0 %v747, 126
        %v766 = vpop.permute.xlu0 %765
        %767 = vrot.lane.b32.xlu0 %v748, 126
        %v768 = vpop.permute.xlu0 %767
        %769 = vrot.lane.b32.xlu0 %v749, 126
        %v770 = vpop.permute.xlu0 %769
        %v774 = vmax.f32 %v762, %v766
        %v775 = vmax.f32 %v763, %v768
        %v776 = vmax.f32 %v764, %v770
        %v780 = vrot.slane %v774, 1
        %v781 = vrot.slane %v775, 1
        %v782 = vsel %vm353, %v780, %v781
        %v783 = vrot.slane %v776, 1
        %v784 = vsel %vm353, %v781, %v783
        %v787 = vmax.f32 %v774, %v782
        %v788 = vmax.f32 %v775, %v784
        %v789 = vrot.slane %v774, 2
        %v790 = vrot.slane %v775, 2
        %v791 = vsel %vm367, %v789, %v790
        %v792 = vrot.slane %v776, 2
        %v793 = vsel %vm367, %v790, %v792
        %v796 = vmax.f32 %v787, %v791
        %v797 = vmax.f32 %v788, %v793
        %800 = vrot.lane.b32.xlu0 %v796, 2
        %v801 = vpop.permute.xlu0 %800
        %802 = vrot.lane.b32.xlu0 %v797, 2
        %v803 = vpop.permute.xlu0 %802
        %806 = vst.msk [vmem:[#allocation2 + $0x2] sm:$0xff] %vm484, %v801
        %807 = vst.msk [vmem:[#allocation2 + $0xa] sm:$0xff] %vm484, %v803
        %808 = vst.msk [vmem:[#allocation2] sm:$0x2] %vm487, %v801
        %809 = vst.msk [vmem:[#allocation2 + $0xc] sm:$0x40] %vm489, %v803
        %810 = vst.msk [vmem:[#allocation2 - $0x2] sm:$0x4] %vm491, %v801
        %811 = vst.msk [vmem:[#allocation2 + $0xe] sm:$0x20] %vm493, %v803
        %v812 = vld [vmem:[#allocation2] sm:$0xff]
        %v813 = vld [vmem:[#allocation2 + $0x8] sm:$0xff]
        %v814 = vld [vmem:[#allocation2 + $0x10] sm:$0xf]
        %818 = vrot.lane.b32.xlu0 %v812, 126
        %v819 = vpop.permute.xlu0 %818
        %820 = vrot.lane.b32.xlu0 %v813, 126
        %v821 = vpop.permute.xlu0 %820
        %822 = vrot.lane.b32.xlu0 %v814, 126
        %v823 = vpop.permute.xlu0 %822
        %827 = vst.msk [vmem:[#allocation2] sm:$0xff] %vm510, %v819
        %828 = vst.msk [vmem:[#allocation2 + $0x8] sm:$0xff] %vm510, %v821
        %829 = vst.msk [vmem:[#allocation2 + $0x10] sm:$0xf] %vm513, %v823
        %v830 = vld [vmem:[#allocation2] sm:$0xff]
        %v831 = vld [vmem:[#allocation2 + $0x8] sm:$0xff]
        %v832 = vld [vmem:[#allocation2 + $0x10] sm:$0xf]
        %836 = vrot.lane.b32.xlu0 %v830, 2
        %v837 = vpop.permute.xlu0 %836
        %838 = vrot.lane.b32.xlu0 %v831, 2
        %v839 = vpop.permute.xlu0 %838
        %840 = vrot.lane.b32.xlu0 %v832, 2
        %v841 = vpop.permute.xlu0 %840
        %845 = vst.msk [vmem:[#allocation2] sm:$0xff] %vm530, %v837
        %846 = vst.msk [vmem:[#allocation2 + $0x8] sm:$0xff] %vm530, %v839
        %847 = vst.msk [vmem:[#allocation2 + $0x10] sm:$0xf] %vm533, %v841
        %v848 = vld [vmem:[#allocation2] sm:$0xff]
        %v849 = vld [vmem:[#allocation2 + $0x8] sm:$0xff]
        %v850 = vld [vmem:[#allocation2 + $0x10] sm:$0xf]
        %854 = vrot.lane.b32.xlu0 %v848, 124
        %v855 = vpop.permute.xlu0 %854
        %856 = vrot.lane.b32.xlu0 %v849, 124
        %v857 = vpop.permute.xlu0 %856
        %858 = vrot.lane.b32.xlu0 %v850, 124
        %v859 = vpop.permute.xlu0 %858
        %863 = vst.msk [vmem:[#allocation2] sm:$0xff] %vm281, %v855
        %864 = vst.msk [vmem:[#allocation2 + $0x8] sm:$0xff] %vm281, %v857
        %865 = vst.msk [vmem:[#allocation2 + $0x10] sm:$0xf] %vm552, %v859
        %v866 = vld [vmem:[#allocation2] sm:$0xff]
        %v867 = vld [vmem:[#allocation2 + $0x8] sm:$0xff]
        %v868 = vld [vmem:[#allocation2 + $0x10] sm:$0xf]
        %872 = vrot.lane.b32.xlu0 %v866, 4
        %v873 = vpop.permute.xlu0 %872
        %874 = vrot.lane.b32.xlu0 %v867, 4
        %v875 = vpop.permute.xlu0 %874
        %876 = vrot.lane.b32.xlu0 %v868, 4
        %v877 = vpop.permute.xlu0 %876
        %881 = vst.msk [vmem:[#allocation2] sm:$0xff] %vm569, %v873
        %882 = vst.msk [vmem:[#allocation2 + $0x8] sm:$0xff] %vm569, %v875
        %883 = vst.msk [vmem:[#allocation2 + $0x10] sm:$0xf] %vm572, %v877
        %v884 = vld [vmem:[#allocation2] sm:$0xff]
        %v885 = vld [vmem:[#allocation2 + $0x8] sm:$0xff]
        %v886 = vld [vmem:[#allocation2 + $0x10] sm:$0xf]
        %v887 = vmul.f32 %v884, 0.078250125
        %v888 = vmul.f32 %v885, 0.078250125
        %v889 = vmul.f32 %v886, 0.078250125
        %v890 = vmul.f32 %v884, 0.24040814
        %v891 = vmul.f32 %v885, 0.24040814
        %v892 = vmul.f32 %v886, 0.24040814
        %896 = vrot.lane.b32.xlu0 %v890, 127
        %v897 = vpop.permute.xlu0 %896
        %898 = vrot.lane.b32.xlu0 %v891, 127
        %v899 = vpop.permute.xlu0 %898
        %900 = vrot.lane.b32.xlu0 %v892, 127
        %v901 = vpop.permute.xlu0 %900
        %v905 = vadd.f32 %v887, %v897
        %v906 = vadd.f32 %v888, %v899
        %v907 = vadd.f32 %v889, %v901
        %v908 = vmul.f32 %v884, 0.36268348
        %v909 = vmul.f32 %v885, 0.36268348
        %v910 = vmul.f32 %v886, 0.36268348
        %914 = vrot.lane.b32.xlu0 %v908, 126
        %v915 = vpop.permute.xlu0 %914
        %916 = vrot.lane.b32.xlu0 %v909, 126
        %v917 = vpop.permute.xlu0 %916
        %918 = vrot.lane.b32.xlu0 %v910, 126
        %v919 = vpop.permute.xlu0 %918
        %v923 = vadd.f32 %v905, %v915
        %v924 = vadd.f32 %v906, %v917
        %v925 = vadd.f32 %v907, %v919
        %926 = vrot.lane.b32.xlu0 %v890, 125
        %v927 = vpop.permute.xlu0 %926
        %928 = vrot.lane.b32.xlu0 %v891, 125
        %v929 = vpop.permute.xlu0 %928
        %930 = vrot.lane.b32.xlu0 %v892, 125
        %v931 = vpop.permute.xlu0 %930
        %v935 = vadd.f32 %v923, %v927
        %v936 = vadd.f32 %v924, %v929
        %v937 = vadd.f32 %v925, %v931
        %941 = vrot.lane.b32.xlu0 %v887, 124
        %v942 = vpop.permute.xlu0 %941
        %943 = vrot.lane.b32.xlu0 %v888, 124
        %v944 = vpop.permute.xlu0 %943
        %945 = vrot.lane.b32.xlu0 %v889, 124
        %v946 = vpop.permute.xlu0 %945
        %v950 = vadd.f32 %v935, %v942
        %v951 = vadd.f32 %v936, %v944
        %v952 = vadd.f32 %v937, %v946
        %v953 = vmul.f32 %v950, 0.078250125
        %v954 = vmul.f32 %v951, 0.078250125
        %v955 = vmul.f32 %v950, 0.24040814
        %v956 = vmul.f32 %v951, 0.24040814
        %v957 = vmul.f32 %v952, 0.24040814
        %v961 = vrot.slane %v955, 1
        %v962 = vrot.slane %v956, 1
        %v963 = vsel %vm353, %v961, %v962
        %v964 = vrot.slane %v957, 1
        %v965 = vsel %vm353, %v962, %v964
        %v968 = vadd.f32 %v953, %v963
        %v969 = vadd.f32 %v954, %v965
        %v970 = vmul.f32 %v950, 0.36268348
        %v971 = vmul.f32 %v951, 0.36268348
        %v972 = vmul.f32 %v952, 0.36268348
        %v976 = vrot.slane %v970, 2
        %v977 = vrot.slane %v971, 2
        %v978 = vsel %vm367, %v976, %v977
        %v979 = vrot.slane %v972, 2
        %v980 = vsel %vm367, %v977, %v979
        %v983 = vadd.f32 %v968, %v978
        %v984 = vadd.f32 %v969, %v980
        %v985 = vrot.slane %v955, 3
        %v986 = vrot.slane %v956, 3
        %v987 = vsel %vm675, %v985, %v986
        %v988 = vrot.slane %v957, 3
        %v989 = vsel %vm675, %v986, %v988
        %v992 = vadd.f32 %v983, %v987
        %v993 = vadd.f32 %v984, %v989
        %v994 = vmul.f32 %v952, 0.078250125
        %v998 = vrot.slane %v953, 4
        %v999 = vrot.slane %v954, 4
        %v1000 = vsel %vm689, %v998, %v999
        %v1001 = vrot.slane %v994, 4
        %v1002 = vsel %vm689, %v999, %v1001
        %v1005 = vadd.f32 %v992, %v1000
        %v1006 = vadd.f32 %v993, %v1002
        %v1007 = vsel %vm234, %v1005, -inf
        %1008 = vmax.xlane.f32.xlu0 %v1007
        %v1009 = vpop.xlane.xlu0 %1008
        %v1010 = vsel %vm234, %v1006, -inf
        %1011 = vmax.xlane.f32.xlu0 %v1010
        %v1012 = vpop.xlane.xlu0 %1011
        %v1013 = vmax.f32 %v1009, %v1012
        %v1014 = vrot.slane %v1013, 4
        %v1015 = vmax.f32 %v1013, %v1014
        %v1016 = vrot.slane %v1015, 2
        %v1017 = vmax.f32 %v1015, %v1016
        %v1018 = vrot.slane %v1017, 1
        %v1019 = vmax.f32 %v1017, %v1018
        %v1020 = vsel %vm234, %v1005, inf
        %1021 = vmin.xlane.f32.xlu0 %v1020
        %v1022 = vpop.xlane.xlu0 %1021
        %v1023 = vsel %vm234, %v1006, inf
        %1024 = vmin.xlane.f32.xlu0 %v1023
        %v1025 = vpop.xlane.xlu0 %1024
        %v1026 = vmin.f32 %v1022, %v1025
        %v1027 = vrot.slane %v1026, 4
        %v1028 = vmin.f32 %v1026, %v1027
        %v1029 = vrot.slane %v1028, 2
        %v1030 = vmin.f32 %v1028, %v1029
        %v1031 = vrot.slane %v1030, 1
        %v1032 = vmin.f32 %v1030, %v1031
        %v1033 = vsub.f32 %v1019, %v1032
        %v1034 = vadd.f32 %v1033, 1e-09
        %v1035 = vrcp.pop %v1034
        %v1036 = vmul.f32 1.0, %v1035
        %v1037 = vsub.f32 %v1005, %v1032
        %v1038 = vsub.f32 %v1006, %v1032
        %v1039 = vmul.f32 %v1037, %v1036
        %v1040 = vmul.f32 %v1038, %v1036
        %1041 = vst.msk [vmem:[%s201] sm:$0xff] %vm234, %v1039
        %1042 = vst.msk [vmem:[%s201 + $0x8] sm:$0xff] %vm234, %v1040
        %s1043 = sand.u32 %s82, 1
        %s1044 = scalar_lea.sflag [#allocation5], %s1043
        %s1045 = sand.u32 %s82, 1
        %s1046 = smul.addr %s1045, 16
        %s1047 = scalar_lea.vmem [#allocation8], %s1046
        // Predicated region
        $region37: #{tpu_custom_call.1} parent=27 // pred_check
          %p1048 = pneg %p92
        $region38: #{tpu_custom_call.1} parent=27 // pred_check_branch
          %1050 = sbr.rel (%p1048) target = $region40
        $region39: #{tpu_custom_call.1} parent=27 // pred_region
          %s1052 = ssub.s32 256, 256
          %1053 = vsyncadd %s1044, %s1052
          %s1054 = smul.addr %s22, 2
          %s1055 = smul.addr %s1054, 128
          %s1056 = scalar_lea.hbm %s2, %s1055
          %s1057 = sshll.u32 %s1047, 4
          %s1058 = int_to_ptr.vmem [resolvable:$true] %s1057
          %1063 = dma.vmem_to_hbm [thread:$0]  %s1058, 256, %s1056, %s1044, 128, 128, 8
        $region40: #{tpu_custom_call.1} parent=27 // pred_fallthru
          _
      $region28: #{tpu_custom_call.1} parent=5 // pred_fallthru
        _
      %p1064 = scmp.le.s32.totalorder 2, %s17
      // Predicated region
      $region41: #{tpu_custom_call.1} parent=5 // pred_check
        %p1065 = pneg %p1064
      $region42: #{tpu_custom_call.1} parent=5 // pred_check_branch
        %1067 = sbr.rel (%p1065) target = $region44
      $region43: #{tpu_custom_call.1} parent=5 // pred_region
        %s1068 = ssub.s32 %s17, 2
        // Predicated region
        $region45: #{tpu_custom_call.1} parent=43 // pred_check
          %p1069 = pneg %p98
        $region46: #{tpu_custom_call.1} parent=43 // pred_check_branch
          %1071 = sbr.rel (%p1069) target = $region48
        $region47: #{tpu_custom_call.1} parent=43 // pred_region
          %s1072 = sand.u32 %s83, 1
          %s1073 = scalar_lea.sflag [#allocation5], %s1072
          %s1074 = sand.u32 %s83, 1
          %s1075 = smul.addr %s1074, 16
          %s1076 = scalar_lea.vmem [#allocation8], %s1075
          %1077 = dma.done %s1073, 256
        $region48: #{tpu_custom_call.1} parent=43 // pred_fallthru
          _
      $region44: #{tpu_custom_call.1} parent=5 // pred_fallthru
        _
    $region6: #{tpu_custom_call.1} parent=1 // loop_footer
      %s21 = sadd.s32 1, %s17
    $region7: #{tpu_custom_call.1} parent=1 // loop_footer_branch
      %16 = sbr.rel target = $region3
    $region8: #{tpu_custom_call.1} parent=1 // loop_exit
      _
    %1078 = vsyncpa [#allocation4], 1
    %s1079 = scalar_lea.sflag [#allocation4], 1
    %1080 = vsyncpa %s1079, 1
    %1081 = vsyncpa [#allocation7], 1
    %s1082 = scalar_lea.sflag [#allocation7], 1
    %1083 = vsyncpa %s1082, 1
    %1084 = vsyncpa [#allocation5], 1
    %s1085 = scalar_lea.sflag [#allocation5], 1
    %1086 = vsyncpa %s1085, 1

</llo_original>
